<compile_context>
chip_gen: v6e
topology: v6e:2x2x1
jax: 0.10.0
libtpu: 0.0.40
codegen_flags: <defaults>
</compile_context>

<pallas_src>
import math
import functools

import jax
import jax.numpy as jnp
from jax.experimental import pallas as pl
from jax.experimental.pallas import tpu as pltpu


# ----------------------------------------------------------------------------
# In-kernel helpers (f32 math)
# ----------------------------------------------------------------------------

def _layernorm(h, w_row, b_row, eps=1e-5):
    mu = jnp.mean(h, axis=-1, keepdims=True)
    var = jnp.mean((h - mu) ** 2, axis=-1, keepdims=True)
    return (h - mu) * jax.lax.rsqrt(var + eps) * w_row + b_row


def _new_gelu(x):
    return 0.5 * x * (1.0 + jnp.tanh(
        math.sqrt(2.0 / math.pi) * (x + 0.044715 * x ** 3)))


# ----------------------------------------------------------------------------
# BlockSpec / tiling helpers
# ----------------------------------------------------------------------------

def _const_spec(shape, index_map):
    """Single-buffered BlockSpec for operands whose block never changes.

    Double-buffering a constant-index block gives no DMA overlap but doubles
    its VMEM footprint; pl.Buffered(1) keeps one copy resident.
    """
    try:
        return pl.BlockSpec(shape, index_map, pipeline_mode=pl.Buffered(1))
    except Exception:                      # older JAX: fall back to default
        return pl.BlockSpec(shape, index_map)


def _pick_q_chunk(T, max_chunk=256):
    """Largest multiple of 8 (<= max_chunk) dividing T; else the full T."""
    if T <= max_chunk:
        return T
    c = (max_chunk // 8) * 8
    while c >= 8:
        if T % c == 0:
            return c
        c -= 8
    return T


def _pick_tile_v(V, C, weight_budget_bytes=24 * (1 << 20)):
    """Vocab tile: largest multiple of 128 dividing V whose two double-buffered
    bf16 (C, tile_v) weight tiles fit the budget; else the full V."""
    cap = max(128, weight_budget_bytes // (2 * 2 * 2 * C))  # 2 heads, 2 bufs, bf16
    cap = min(cap, V)
    t = (cap // 128) * 128
    while t >= 128:
        if V % t == 0:
            return t
        t -= 128
    return V


# ----------------------------------------------------------------------------
# Pallas kernels
# ----------------------------------------------------------------------------

def block_kernel(x_ref,
                 ln1w_ref, ln1b_ref, wqkv_ref, bqkv_ref, wpr_ref, bpr_ref,
                 ln2w_ref, ln2b_ref, wfc_ref, bfc_ref, wp2_ref, bp2_ref,
                 o_ref, qkv_sc, *, n_head, q_chunk, approx_recip):
    """One full GPT block for a single batch element (tile shape (1, T, C))."""
    T, C = x_ref.shape[1], x_ref.shape[2]
    hd = C // n_head
    scale = 1.0 / math.sqrt(hd)

    # ---- phase A: LN1 + fused QKV projection for the whole tile (M = T) ----
    x_full = x_ref[0].astype(jnp.float32)
    h = _layernorm(x_full, ln1w_ref[...], ln1b_ref[...])
    qkv = jnp.dot(h.astype(jnp.bfloat16), wqkv_ref[...],
                  preferred_element_type=jnp.float32) + bqkv_ref[...]
    qkv_sc[...] = qkv.astype(jnp.bfloat16)       # bf16 scratch: MXU-ready K/V

    # ---- phase B: query-row chunks (bounded scores / GELU intermediates) ---
    n_chunks = T // q_chunk                       # q_chunk divides T by choice
    for ci in range(n_chunks):
        r0 = ci * q_chunk

        # Causal mask generated in-kernel (VPU iota+compare, no HBM bias DMA).
        rows = r0 + jax.lax.broadcasted_iota(jnp.int32, (q_chunk, T), 0)
        cols = jax.lax.broadcasted_iota(jnp.int32, (q_chunk, T), 1)
        causal = rows >= cols                     # every row keeps its diagonal

        # Per-head attention; each head's output is folded straight into the
        # output projection and accumulated in f32 -> no per-head (T, C)
        # scratch and no sub-128-lane masked stores.
        # TODO(synk): for large n_head, move heads onto a grid axis.
        acc = jnp.zeros((q_chunk, C), jnp.float32)
        for hix in range(n_head):
            q0 = hix * hd
            qh = qkv_sc[r0:r0 + q_chunk, q0:q0 + hd]            # (q_chunk, hd)
            kh = qkv_sc[:, C + q0:C + q0 + hd]                  # (T, hd)
            vh = qkv_sc[:, 2 * C + q0:2 * C + q0 + hd]          # (T, hd)
            s = jax.lax.dot_general(                            # q @ k.T, f32
                qh, kh, dimension_numbers=(((1,), (1,)), ((), ())),
                preferred_element_type=jnp.float32) * scale
            s = jnp.where(causal, s, -1e30)
            m = jnp.max(s, axis=-1, keepdims=True)
            e = jnp.exp(s - m)
            denom = jnp.sum(e, axis=-1, keepdims=True)
            if approx_recip:
                p = e * pl.reciprocal(denom, approx=True)       # EUP slot
            else:
                p = e / denom
            oh = jnp.dot(p.astype(jnp.bfloat16), vh,
                         preferred_element_type=jnp.float32)    # (q_chunk, hd)
            acc = acc + jnp.dot(oh.astype(jnp.bfloat16),
                                wpr_ref[q0:q0 + hd, :],
                                preferred_element_type=jnp.float32)

        x_chunk = x_ref[0, r0:r0 + q_chunk, :].astype(jnp.float32)
        x1 = x_chunk + acc + bpr_ref[...]          # residual 1 (f32)

        # ---- MLP branch on the same row chunk ------------------------------
        h2 = _layernorm(x1, ln2w_ref[...], ln2b_ref[...])
        fc = jnp.dot(h2.astype(jnp.bfloat16), wfc_ref[...],
                     preferred_element_type=jnp.float32) + bfc_ref[...]
        g = _new_gelu(fc)
        mlp = jnp.dot(g.astype(jnp.bfloat16), wp2_ref[...],
                      preferred_element_type=jnp.float32) + bp2_ref[...]
        o_ref[0, r0:r0 + q_chunk, :] = (x1 + mlp).astype(o_ref.dtype)


def lastrow_ln_kernel(x_ref, w_ref, b_ref, o_ref):
    """Final LayerNorm of the last-token rows only (computed once)."""
    o_ref[...] = _layernorm(x_ref[...].astype(jnp.float32),
                            w_ref[...], b_ref[...]).astype(o_ref.dtype)


def heads_kernel(xn_ref, wlm_ref, wexp_ref, cls_ref, exp_ref):
    """Both vocab heads on one V tile (last-token LN already hoisted)."""
    xn = xn_ref[...]                               # (B, C) bf16, LN'd
    cls_ref[...] = jnp.dot(xn, wlm_ref[...], preferred_element_type=jnp.float32)
    exp_ref[...] = jnp.dot(xn, wexp_ref[...], preferred_element_type=jnp.float32)


def lnf_kernel(x_ref, w_ref, b_ref, o_ref):
    """Full-sequence final LayerNorm (only invoked when return_hidden=True)."""
    o_ref[0] = _layernorm(x_ref[0].astype(jnp.float32),
                          w_ref[...], b_ref[...]).astype(o_ref.dtype)


# ----------------------------------------------------------------------------
# pallas_call wrappers
# ----------------------------------------------------------------------------

def run_block(x, lp, n_head, *, q_chunk, approx_recip):
    B, T, C = x.shape
    weights = [lp['ln1_w'], lp['ln1_b'],
               lp['w_qkv'], lp['b_qkv'],
               lp['w_proj'], lp['b_proj'],
               lp['ln2_w'], lp['ln2_b'],
               lp['w_fc'], lp['b_fc'],
               lp['w_fc2'], lp['b_fc2']]

    in_specs = [pl.BlockSpec((1, T, C), lambda b: (b, 0, 0))]
    for w in weights:
        in_specs.append(_const_spec(w.shape, lambda b: (0, 0)))

    # Explicit VMEM budget from the actual resident set:
    #   weights single-buffered + x/out double-buffered + qkv scratch +
    #   per-chunk intermediates, with 50% margin, clamped to a safe range.
    wbytes = sum(int(w.size) * w.dtype.itemsize for w in weights)
    act_bytes = 2 * 2 * T * C * 4                  # x in + out, double-buffered
    scr_bytes = T * 3 * C * 2                      # bf16 qkv scratch
    inner = q_chunk * T * 4 + q_chunk * 4 * C * 4 + 4 * q_chunk * C * 4
    est = int(1.5 * (wbytes + act_bytes + scr_bytes + inner))
    vmem_limit = int(min(64 * (1 << 20), max(24 * (1 << 20), est)))

    return pl.pallas_call(
        functools.partial(block_kernel, n_head=n_head, q_chunk=q_chunk,
                          approx_recip=approx_recip),
        out_shape=jax.ShapeDtypeStruct((B, T, C), x.dtype),
        grid=(B,),
        in_specs=in_specs,
        out_specs=pl.BlockSpec((1, T, C), lambda b: (b, 0, 0)),
        scratch_shapes=[pltpu.VMEM((T, 3 * C), jnp.bfloat16)],
        compiler_params=pltpu.CompilerParams(
            dimension_semantics=("parallel",),
            vmem_limit_bytes=vmem_limit),
    )(x, *weights)


def run_lastrow_ln(x_last, ln_f_w, ln_f_b):
    """LN of the (B, C) last-token rows; output bf16 (MXU-ready for heads)."""
    B, C = x_last.shape
    return pl.pallas_call(
        lastrow_ln_kernel,
        out_shape=jax.ShapeDtypeStruct((B, C), jnp.bfloat16),
    )(x_last, ln_f_w, ln_f_b)


def run_heads(xn_last, w_lm, w_exp):
    B, C = xn_last.shape
    V = w_lm.shape[1]
    tile_v = _pick_tile_v(V, C)

    wtile_bytes = 2 * 2 * C * tile_v * 2           # 2 heads, double-buffered, bf16
    out_bytes = 2 * 2 * B * tile_v * 4
    est = 2 * (wtile_bytes + out_bytes + B * C * 2)
    vmem_limit = int(min(64 * (1 << 20), max(16 * (1 << 20), est)))

    return pl.pallas_call(
        heads_kernel,
        out_shape=(jax.ShapeDtypeStruct((B, V), jnp.float32),
                   jax.ShapeDtypeStruct((B, V), jnp.float32)),
        grid=(V // tile_v,),
        in_specs=[_const_spec((B, C), lambda v: (0, 0)),
                  pl.BlockSpec((C, tile_v), lambda v: (0, v)),
                  pl.BlockSpec((C, tile_v), lambda v: (0, v))],
        out_specs=(pl.BlockSpec((B, tile_v), lambda v: (0, v)),
                   pl.BlockSpec((B, tile_v), lambda v: (0, v))),
        compiler_params=pltpu.CompilerParams(
            dimension_semantics=("parallel",),
            vmem_limit_bytes=vmem_limit),
    )(xn_last, w_lm, w_exp)


def run_final_ln(x, ln_f_w, ln_f_b):
    B, T, C = x.shape
    return pl.pallas_call(
        lnf_kernel,
        out_shape=jax.ShapeDtypeStruct((B, T, C), x.dtype),
        grid=(B,),
        in_specs=[pl.BlockSpec((1, T, C), lambda b: (b, 0, 0)),
                  _const_spec(ln_f_w.shape, lambda b: (0, 0)),
                  _const_spec(ln_f_b.shape, lambda b: (0, 0))],
        out_specs=pl.BlockSpec((1, T, C), lambda b: (b, 0, 0)),
        compiler_params=pltpu.CompilerParams(dimension_semantics=("parallel",)),
    )(x, ln_f_w, ln_f_b)


def scmulan_forward(params, idx, x_expr, n_head, return_hidden=False,
                    approx_recip=True):
    """Mirrors scMulanModel.forward(idx=idx, x_expr=x_expr) in eval mode.

    Return arity (3-tuple with return_hidden, else 5-tuple) intentionally
    mirrors the PyTorch module's API.
    """
    tok_emb = params['wte'][idx]                   # (B, T, C) gather (glue)
    expr_emb = params['wee'][x_expr]               # (B, T, C)
    x = (tok_emb + expr_emb).astype(jnp.float32)   # dropout p=0.0 -> identity
    B, T, C = x.shape
    q_chunk = _pick_q_chunk(T)

    for lp in params['blocks']:
        x = run_block(x, lp, n_head, q_chunk=q_chunk, approx_recip=approx_recip)

    # Only the last token feeds the heads; its LayerNorm is computed exactly
    # once and reused across every vocab tile.
    x_last = x[:, -1, :]                           # (B, C)
    xn_last = run_lastrow_ln(x_last, params['ln_f_w'], params['ln_f_b'])
    cls2d, exp2d = run_heads(xn_last, params['lm_head'], params['epx_head'])
    logits_cls = cls2d[:, None, :]                 # (B, 1, V)
    logits_exp = exp2d[:, None, :]

    if return_hidden:
        hidden = run_final_ln(x, params['ln_f_w'], params['ln_f_b'])
        return logits_cls, logits_exp, hidden
    # loss path requires `targets`, which is None here (as in the reference fwd)
    return logits_cls, logits_exp, None, None, None


# ----------------------------------------------------------------------------
# Pure-JAX reference (f32 math on the same bf16-stored weights)
# ----------------------------------------------------------------------------

def ref_forward(params, idx, x_expr, n_head):
    def ln(h, w, b):
        mu = h.mean(-1, keepdims=True)
        var = ((h - mu) ** 2).mean(-1, keepdims=True)
        return (h - mu) / jnp.sqrt(var + 1e-5) * w[0] + b[0]

    f32 = lambda a: a.astype(jnp.float32)
    x = params['wte'][idx] + params['wee'][x_expr]
    B, T, C = x.shape
    hd = C // n_head
    for lp in params['blocks']:
        h = ln(x, lp['ln1_w'], lp['ln1_b'])
        qkv = h @ f32(lp['w_qkv']) + lp['b_qkv'][0]
        q, k, v = jnp.split(qkv, 3, axis=-1)
        q = q.reshape(B, T, n_head, hd).transpose(0, 2, 1, 3)
        k = k.reshape(B, T, n_head, hd).transpose(0, 2, 1, 3)
        v = v.reshape(B, T, n_head, hd).transpose(0, 2, 1, 3)
        s = jnp.einsum('bhtd,bhsd->bhts', q, k) / math.sqrt(hd)
        mask = jnp.tril(jnp.ones((T, T), bool))
        s = jnp.where(mask, s, -jnp.inf)
        p = jax.nn.softmax(s, axis=-1)
        y = jnp.einsum('bhts,bhsd->bhtd', p, v)
        y = y.transpose(0, 2, 1, 3).reshape(B, T, C)
        x = x + (y @ f32(lp['w_proj']) + lp['b_proj'][0])
        h2 = ln(x, lp['ln2_w'], lp['ln2_b'])
        fc = h2 @ f32(lp['w_fc']) + lp['b_fc'][0]
        g = 0.5 * fc * (1.0 + jnp.tanh(math.sqrt(2.0 / math.pi)
                                       * (fc + 0.044715 * fc ** 3)))
        x = x + (g @ f32(lp['w_fc2']) + lp['b_fc2'][0])
    xn = ln(x, params['ln_f_w'], params['ln_f_b'])
    last = xn[:, -1:, :]
    return last @ f32(params['lm_head']), last @ f32(params['epx_head']), xn


# ----------------------------------------------------------------------------
# Deterministic parameter init (GPT-style: N(0, 0.02) weights, zero biases)
# ----------------------------------------------------------------------------

def init_params(key, vocab_size, expression_level, n_embd, n_layer):
    def nrm(k, shape, dtype=jnp.float32):
        return (0.02 * jax.random.normal(k, shape, jnp.float32)).astype(dtype)

    keys = jax.random.split(key, 4 + 4 * n_layer)
    ki = iter(keys)
    params = {
        'wte': nrm(next(ki), (vocab_size, n_embd)),
        'wee': nrm(next(ki), (expression_level + 1, n_embd)),
        'ln_f_w': jnp.ones((1, n_embd), jnp.float32),
        'ln_f_b': jnp.zeros((1, n_embd), jnp.float32),
        # nn.Linear(n_embd, V, bias=False) weight is (V, C); stored transposed
        # and in bf16 (MXU operand; kernels accumulate in f32).
        'lm_head': nrm(next(ki), (n_embd, vocab_size), jnp.bfloat16),
        'epx_head': nrm(next(ki), (n_embd, vocab_size), jnp.bfloat16),
        'blocks': [],
    }
    for _ in range(n_layer):
        lp = {
            'ln1_w': jnp.ones((1, n_embd), jnp.float32),
            'ln1_b': jnp.zeros((1, n_embd), jnp.float32),
            'w_qkv': nrm(next(ki), (n_embd, 3 * n_embd), jnp.bfloat16),
            'b_qkv': jnp.zeros((1, 3 * n_embd), jnp.float32),
            'w_proj': nrm(next(ki), (n_embd, n_embd), jnp.bfloat16),
            'b_proj': jnp.zeros((1, n_embd), jnp.float32),
            'ln2_w': jnp.ones((1, n_embd), jnp.float32),
            'ln2_b': jnp.zeros((1, n_embd), jnp.float32),
            'w_fc': nrm(next(ki), (n_embd, 4 * n_embd), jnp.bfloat16),
            'b_fc': jnp.zeros((1, 4 * n_embd), jnp.float32),
            'w_fc2': nrm(next(ki), (4 * n_embd, n_embd), jnp.bfloat16),
            'b_fc2': jnp.zeros((1, n_embd), jnp.float32),
        }
        params['blocks'].append(lp)
    return params


# ----------------------------------------------------------------------------

if __name__ == "__main__":
    # Small config consistent with scMulanModel's GPTConfig-style fields.
    B, T = 2, 8
    vocab_size = 64
    expression_level = 10
    n_embd = 32
    n_head = 4
    n_layer = 2

    root = jax.random.PRNGKey(0)
    k_params, k_idx, k_expr = jax.random.split(root, 3)
    params = init_params(k_params, vocab_size, expression_level, n_embd, n_layer)

    idx = jax.random.randint(k_idx, (B, T), 1, vocab_size, dtype=jnp.int32)
    x_expr = jax.random.randint(k_expr, (B, T), 0, expression_level + 1,
                                dtype=jnp.int32)

    # Default (inference) path: no hidden-state writeback.
    logits_cls, logits_exp, loss, loss_cls, loss_exp = scmulan_forward(
        params, idx, x_expr, n_head)
    jax.block_until_ready((logits_cls, logits_exp))

    # return_hidden path (exercises the full-sequence final-LayerNorm kernel).
    h_cls, h_exp, hidden = scmulan_forward(params, idx, x_expr, n_head,
                                           return_hidden=True)
    jax.block_until_ready(hidden)

    # Correctness check against a pure-JAX f32 reference of the same math.
    ref_cls, ref_exp, ref_hidden = ref_forward(params, idx, x_expr, n_head)
    assert logits_cls.shape == (B, 1, vocab_size)
    assert logits_exp.shape == (B, 1, vocab_size)
    assert hidden.shape == (B, T, n_embd)
    assert jnp.allclose(logits_cls, ref_cls, atol=3e-2, rtol=3e-2)
    assert jnp.allclose(logits_exp, ref_exp, atol=3e-2, rtol=3e-2)
    assert jnp.allclose(h_cls, ref_cls, atol=3e-2, rtol=3e-2)
    assert jnp.allclose(hidden, ref_hidden, atol=5e-2, rtol=5e-2)

    print("KERNEL_OK")
</pallas_src>

<mosaic_0001>
module attributes {stable_mosaic.version = 11 : i64} {
  func.func @block_kernel(%arg0: i32, %arg1: memref<1x8x32xf32, #tpu.memory_space<vmem>>, %arg2: memref<1x32xf32, #tpu.memory_space<vmem>>, %arg3: memref<1x32xf32, #tpu.memory_space<vmem>>, %arg4: memref<32x96xbf16, #tpu.memory_space<vmem>>, %arg5: memref<1x96xf32, #tpu.memory_space<vmem>>, %arg6: memref<32x32xbf16, #tpu.memory_space<vmem>>, %arg7: memref<1x32xf32, #tpu.memory_space<vmem>>, %arg8: memref<1x32xf32, #tpu.memory_space<vmem>>, %arg9: memref<1x32xf32, #tpu.memory_space<vmem>>, %arg10: memref<32x128xbf16, #tpu.memory_space<vmem>>, %arg11: memref<1x128xf32, #tpu.memory_space<vmem>>, %arg12: memref<128x32xbf16, #tpu.memory_space<vmem>>, %arg13: memref<1x32xf32, #tpu.memory_space<vmem>>, %arg14: memref<1x8x32xf32, #tpu.memory_space<vmem>>, %arg15: memref<8x96xbf16, #tpu.memory_space<vmem>>) attributes {dimension_semantics = [#tpu.dimension_semantics<parallel>], iteration_bounds = array<i64: 2>, scalar_prefetch = 0 : i64, scratch_operands = 1 : i64, tpu.core_type = #tpu.core_type<tc>, window_params = [{transform_indices = @transform_0, window_bounds = array<i64: 1, 8, 32>}, {pipeline_mode = #tpu.pipeline_mode<synchronous>, transform_indices = @transform_1, window_bounds = array<i64: 1, 32>}, {pipeline_mode = #tpu.pipeline_mode<synchronous>, transform_indices = @transform_2, window_bounds = array<i64: 1, 32>}, {pipeline_mode = #tpu.pipeline_mode<synchronous>, transform_indices = @transform_3, window_bounds = array<i64: 32, 96>}, {pipeline_mode = #tpu.pipeline_mode<synchronous>, transform_indices = @transform_4, window_bounds = array<i64: 1, 96>}, {pipeline_mode = #tpu.pipeline_mode<synchronous>, transform_indices = @transform_5, window_bounds = array<i64: 32, 32>}, {pipeline_mode = #tpu.pipeline_mode<synchronous>, transform_indices = @transform_6, window_bounds = array<i64: 1, 32>}, {pipeline_mode = #tpu.pipeline_mode<synchronous>, transform_indices = @transform_7, window_bounds = array<i64: 1, 32>}, {pipeline_mode = #tpu.pipeline_mode<synchronous>, transform_indices = @transform_8, window_bounds = array<i64: 1, 32>}, {pipeline_mode = #tpu.pipeline_mode<synchronous>, transform_indices = @transform_9, window_bounds = array<i64: 32, 128>}, {pipeline_mode = #tpu.pipeline_mode<synchronous>, transform_indices = @transform_10, window_bounds = array<i64: 1, 128>}, {pipeline_mode = #tpu.pipeline_mode<synchronous>, transform_indices = @transform_11, window_bounds = array<i64: 128, 32>}, {pipeline_mode = #tpu.pipeline_mode<synchronous>, transform_indices = @transform_12, window_bounds = array<i64: 1, 32>}, {transform_indices = @transform_13, window_bounds = array<i64: 1, 8, 32>}]} {
    %c0 = arith.constant 0 : index
    %c0_0 = arith.constant 0 : index
    %c0_1 = arith.constant 0 : index
    %0 = vector.load %arg1[%c0, %c0_0, %c0_1] : memref<1x8x32xf32, #tpu.memory_space<vmem>>, vector<1x8x32xf32>
    %1 = vector.shape_cast %0 : vector<1x8x32xf32> to vector<8x32xf32>
    %c0_2 = arith.constant 0 : index
    %c0_3 = arith.constant 0 : index
    %2 = vector.load %arg2[%c0_2, %c0_3] : memref<1x32xf32, #tpu.memory_space<vmem>>, vector<1x32xf32>
    %c0_4 = arith.constant 0 : index
    %c0_5 = arith.constant 0 : index
    %3 = vector.load %arg3[%c0_4, %c0_5] : memref<1x32xf32, #tpu.memory_space<vmem>>, vector<1x32xf32>
    %cst = arith.constant dense<0.000000e+00> : vector<8xf32>
    %4 = vector.multi_reduction <add>, %1, %cst [1] : vector<8x32xf32> to vector<8xf32>
    %5 = vector.shape_cast %4 : vector<8xf32> to vector<8x1xf32>
    %cst_6 = arith.constant 3.200000e+01 : f32
    %6 = vector.broadcast %cst_6 : f32 to vector<8x1xf32>
    %7 = arith.divf %5, %6 : vector<8x1xf32>
    %8 = vector.broadcast %7 : vector<8x1xf32> to vector<8x32xf32>
    %9 = arith.subf %1, %8 : vector<8x32xf32>
    %10 = arith.mulf %9, %9 : vector<8x32xf32>
    %cst_7 = arith.constant dense<0.000000e+00> : vector<8xf32>
    %11 = vector.multi_reduction <add>, %10, %cst_7 [1] : vector<8x32xf32> to vector<8xf32>
    %12 = vector.shape_cast %11 : vector<8xf32> to vector<8x1xf32>
    %cst_8 = arith.constant 3.200000e+01 : f32
    %13 = vector.broadcast %cst_8 : f32 to vector<8x1xf32>
    %14 = arith.divf %12, %13 : vector<8x1xf32>
    %15 = vector.broadcast %7 : vector<8x1xf32> to vector<8x32xf32>
    %16 = arith.subf %1, %15 : vector<8x32xf32>
    %cst_9 = arith.constant 9.99999974E-6 : f32
    %17 = vector.broadcast %cst_9 : f32 to vector<8x1xf32>
    %18 = arith.addf %14, %17 : vector<8x1xf32>
    %19 = math.rsqrt %18 : vector<8x1xf32>
    %20 = vector.broadcast %19 : vector<8x1xf32> to vector<8x32xf32>
    %21 = arith.mulf %16, %20 : vector<8x32xf32>
    %22 = vector.broadcast %2 : vector<1x32xf32> to vector<8x32xf32>
    %23 = arith.mulf %21, %22 : vector<8x32xf32>
    %24 = vector.broadcast %3 : vector<1x32xf32> to vector<8x32xf32>
    %25 = arith.addf %23, %24 : vector<8x32xf32>
    %26 = arith.truncf %25 : vector<8x32xf32> to vector<8x32xbf16>
    %c0_10 = arith.constant 0 : index
    %c0_11 = arith.constant 0 : index
    %27 = vector.load %arg4[%c0_10, %c0_11] : memref<32x96xbf16, #tpu.memory_space<vmem>>, vector<32x96xbf16>
    %cst_12 = arith.constant dense<0.000000e+00> : vector<8x96xf32>
    %28 = tpu.matmul %26, %27, %cst_12 {dimension_numbers = #tpu.dot_dimension_numbers<[1], [0], [0], [1], [0, 0, 1, 1], [], []>} : vector<8x32xbf16>, vector<32x96xbf16>, vector<8x96xf32> -> vector<8x96xf32>
    %c0_13 = arith.constant 0 : index
    %c0_14 = arith.constant 0 : index
    %29 = vector.load %arg5[%c0_13, %c0_14] : memref<1x96xf32, #tpu.memory_space<vmem>>, vector<1x96xf32>
    %30 = vector.broadcast %29 : vector<1x96xf32> to vector<8x96xf32>
    %31 = arith.addf %28, %30 : vector<8x96xf32>
    %32 = arith.truncf %31 : vector<8x96xf32> to vector<8x96xbf16>
    %c0_15 = arith.constant 0 : index
    %c0_16 = arith.constant 0 : index
    %33 = vector.load %arg15[%c0_15, %c0_16] : memref<8x96xbf16, #tpu.memory_space<vmem>>, vector<8x96xbf16>
    tpu.vector_store %arg15[%c0_15, %c0_16], %32 {strides = array<i32>} : memref<8x96xbf16, #tpu.memory_space<vmem>>, vector<8x96xbf16>,
    %34 = tpu.iota {dimensions = array<i32: 0>} : vector<8x8xi32>
    %c0_i32 = arith.constant 0 : i32
    %35 = vector.broadcast %c0_i32 : i32 to vector<8x8xi32>
    %36 = arith.addi %35, %34 : vector<8x8xi32>
    %37 = tpu.iota {dimensions = array<i32: 1>} : vector<8x8xi32>
    %38 = arith.cmpi sge, %36, %37 : vector<8x8xi32>
    %cst_17 = arith.constant 0.000000e+00 : f32
    %39 = vector.broadcast %cst_17 : f32 to vector<8x32xf32>
    %c0_18 = arith.constant 0 : index
    %c0_19 = arith.constant 0 : index
    %40 = vector.load %arg15[%c0_18, %c0_19] : memref<8x96xbf16, #tpu.memory_space<vmem>>, vector<8x8xbf16>
    %c0_20 = arith.constant 0 : index
    %c32 = arith.constant 32 : index
    %41 = vector.load %arg15[%c0_20, %c32] : memref<8x96xbf16, #tpu.memory_space<vmem>>, vector<8x8xbf16>
    %c0_21 = arith.constant 0 : index
    %c64 = arith.constant 64 : index
    %42 = vector.load %arg15[%c0_21, %c64] : memref<8x96xbf16, #tpu.memory_space<vmem>>, vector<8x8xbf16>
    %cst_22 = arith.constant dense<0.000000e+00> : vector<8x8xf32>
    %43 = tpu.matmul %40, %41, %cst_22 {dimension_numbers = #tpu.dot_dimension_numbers<[1], [1], [0], [0], [0, 0, 1, 0], [], []>} : vector<8x8xbf16>, vector<8x8xbf16>, vector<8x8xf32> -> vector<8x8xf32>
    %cst_23 = arith.constant 0.353553385 : f32
    %44 = vector.broadcast %cst_23 : f32 to vector<8x8xf32>
    %45 = arith.mulf %43, %44 : vector<8x8xf32>
    %cst_24 = arith.constant -1.000000e+30 : f32
    %46 = vector.broadcast %cst_24 : f32 to vector<8x8xf32>
    %47 = arith.select %38, %45, %46 : vector<8x8xi1>, vector<8x8xf32>
    %cst_25 = arith.constant dense<0xFF800000> : vector<8xf32>
    %48 = vector.multi_reduction <maximumf>, %47, %cst_25 [1] : vector<8x8xf32> to vector<8xf32>
    %49 = vector.shape_cast %48 : vector<8xf32> to vector<8x1xf32>
    %50 = vector.broadcast %49 : vector<8x1xf32> to vector<8x8xf32>
    %51 = arith.subf %47, %50 : vector<8x8xf32>
    %52 = math.exp %51 : vector<8x8xf32>
    %cst_26 = arith.constant dense<0.000000e+00> : vector<8xf32>
    %53 = vector.multi_reduction <add>, %52, %cst_26 [1] : vector<8x8xf32> to vector<8xf32>
    %54 = vector.shape_cast %53 : vector<8xf32> to vector<8x1xf32>
    %55 = tpu.reciprocal %54 {approx = true} : vector<8x1xf32> -> vector<8x1xf32>
    %56 = vector.broadcast %55 : vector<8x1xf32> to vector<8x8xf32>
    %57 = arith.mulf %52, %56 : vector<8x8xf32>
    %58 = arith.truncf %57 : vector<8x8xf32> to vector<8x8xbf16>
    %cst_27 = arith.constant dense<0.000000e+00> : vector<8x8xf32>
    %59 = tpu.matmul %58, %42, %cst_27 {dimension_numbers = #tpu.dot_dimension_numbers<[1], [0], [0], [1], [0, 0, 1, 1], [], []>} : vector<8x8xbf16>, vector<8x8xbf16>, vector<8x8xf32> -> vector<8x8xf32>
    %60 = arith.truncf %59 : vector<8x8xf32> to vector<8x8xbf16>
    %c0_28 = arith.constant 0 : index
    %c0_29 = arith.constant 0 : index
    %61 = vector.load %arg6[%c0_28, %c0_29] : memref<32x32xbf16, #tpu.memory_space<vmem>>, vector<8x32xbf16>
    %cst_30 = arith.constant dense<0.000000e+00> : vector<8x32xf32>
    %62 = tpu.matmul %60, %61, %cst_30 {dimension_numbers = #tpu.dot_dimension_numbers<[1], [0], [0], [1], [0, 0, 1, 1], [], []>} : vector<8x8xbf16>, vector<8x32xbf16>, vector<8x32xf32> -> vector<8x32xf32>
    %63 = arith.addf %39, %62 : vector<8x32xf32>
    %c0_31 = arith.constant 0 : index
    %c8 = arith.constant 8 : index
    %64 = vector.load %arg15[%c0_31, %c8] : memref<8x96xbf16, #tpu.memory_space<vmem>>, vector<8x8xbf16>
    %c0_32 = arith.constant 0 : index
    %c40 = arith.constant 40 : index
    %65 = vector.load %arg15[%c0_32, %c40] : memref<8x96xbf16, #tpu.memory_space<vmem>>, vector<8x8xbf16>
    %c0_33 = arith.constant 0 : index
    %c72 = arith.constant 72 : index
    %66 = vector.load %arg15[%c0_33, %c72] : memref<8x96xbf16, #tpu.memory_space<vmem>>, vector<8x8xbf16>
    %cst_34 = arith.constant dense<0.000000e+00> : vector<8x8xf32>
    %67 = tpu.matmul %64, %65, %cst_34 {dimension_numbers = #tpu.dot_dimension_numbers<[1], [1], [0], [0], [0, 0, 1, 0], [], []>} : vector<8x8xbf16>, vector<8x8xbf16>, vector<8x8xf32> -> vector<8x8xf32>
    %cst_35 = arith.constant 0.353553385 : f32
    %68 = vector.broadcast %cst_35 : f32 to vector<8x8xf32>
    %69 = arith.mulf %67, %68 : vector<8x8xf32>
    %cst_36 = arith.constant -1.000000e+30 : f32
    %70 = vector.broadcast %cst_36 : f32 to vector<8x8xf32>
    %71 = arith.select %38, %69, %70 : vector<8x8xi1>, vector<8x8xf32>
    %cst_37 = arith.constant dense<0xFF800000> : vector<8xf32>
    %72 = vector.multi_reduction <maximumf>, %71, %cst_37 [1] : vector<8x8xf32> to vector<8xf32>
    %73 = vector.shape_cast %72 : vector<8xf32> to vector<8x1xf32>
    %74 = vector.broadcast %73 : vector<8x1xf32> to vector<8x8xf32>
    %75 = arith.subf %71, %74 : vector<8x8xf32>
    %76 = math.exp %75 : vector<8x8xf32>
    %cst_38 = arith.constant dense<0.000000e+00> : vector<8xf32>
    %77 = vector.multi_reduction <add>, %76, %cst_38 [1] : vector<8x8xf32> to vector<8xf32>
    %78 = vector.shape_cast %77 : vector<8xf32> to vector<8x1xf32>
    %79 = tpu.reciprocal %78 {approx = true} : vector<8x1xf32> -> vector<8x1xf32>
    %80 = vector.broadcast %79 : vector<8x1xf32> to vector<8x8xf32>
    %81 = arith.mulf %76, %80 : vector<8x8xf32>
    %82 = arith.truncf %81 : vector<8x8xf32> to vector<8x8xbf16>
    %cst_39 = arith.constant dense<0.000000e+00> : vector<8x8xf32>
    %83 = tpu.matmul %82, %66, %cst_39 {dimension_numbers = #tpu.dot_dimension_numbers<[1], [0], [0], [1], [0, 0, 1, 1], [], []>} : vector<8x8xbf16>, vector<8x8xbf16>, vector<8x8xf32> -> vector<8x8xf32>
    %84 = arith.truncf %83 : vector<8x8xf32> to vector<8x8xbf16>
    %c8_40 = arith.constant 8 : index
    %c0_41 = arith.constant 0 : index
    %85 = vector.load %arg6[%c8_40, %c0_41] : memref<32x32xbf16, #tpu.memory_space<vmem>>, vector<8x32xbf16>
    %cst_42 = arith.constant dense<0.000000e+00> : vector<8x32xf32>
    %86 = tpu.matmul %84, %85, %cst_42 {dimension_numbers = #tpu.dot_dimension_numbers<[1], [0], [0], [1], [0, 0, 1, 1], [], []>} : vector<8x8xbf16>, vector<8x32xbf16>, vector<8x32xf32> -> vector<8x32xf32>
    %87 = arith.addf %63, %86 : vector<8x32xf32>
    %c0_43 = arith.constant 0 : index
    %c16 = arith.constant 16 : index
    %88 = vector.load %arg15[%c0_43, %c16] : memref<8x96xbf16, #tpu.memory_space<vmem>>, vector<8x8xbf16>
    %c0_44 = arith.constant 0 : index
    %c48 = arith.constant 48 : index
    %89 = vector.load %arg15[%c0_44, %c48] : memref<8x96xbf16, #tpu.memory_space<vmem>>, vector<8x8xbf16>
    %c0_45 = arith.constant 0 : index
    %c80 = arith.constant 80 : index
    %90 = vector.load %arg15[%c0_45, %c80] : memref<8x96xbf16, #tpu.memory_space<vmem>>, vector<8x8xbf16>
    %cst_46 = arith.constant dense<0.000000e+00> : vector<8x8xf32>
    %91 = tpu.matmul %88, %89, %cst_46 {dimension_numbers = #tpu.dot_dimension_numbers<[1], [1], [0], [0], [0, 0, 1, 0], [], []>} : vector<8x8xbf16>, vector<8x8xbf16>, vector<8x8xf32> -> vector<8x8xf32>
    %cst_47 = arith.constant 0.353553385 : f32
    %92 = vector.broadcast %cst_47 : f32 to vector<8x8xf32>
    %93 = arith.mulf %91, %92 : vector<8x8xf32>
    %cst_48 = arith.constant -1.000000e+30 : f32
    %94 = vector.broadcast %cst_48 : f32 to vector<8x8xf32>
    %95 = arith.select %38, %93, %94 : vector<8x8xi1>, vector<8x8xf32>
    %cst_49 = arith.constant dense<0xFF800000> : vector<8xf32>
    %96 = vector.multi_reduction <maximumf>, %95, %cst_49 [1] : vector<8x8xf32> to vector<8xf32>
    %97 = vector.shape_cast %96 : vector<8xf32> to vector<8x1xf32>
    %98 = vector.broadcast %97 : vector<8x1xf32> to vector<8x8xf32>
    %99 = arith.subf %95, %98 : vector<8x8xf32>
    %100 = math.exp %99 : vector<8x8xf32>
    %cst_50 = arith.constant dense<0.000000e+00> : vector<8xf32>
    %101 = vector.multi_reduction <add>, %100, %cst_50 [1] : vector<8x8xf32> to vector<8xf32>
    %102 = vector.shape_cast %101 : vector<8xf32> to vector<8x1xf32>
    %103 = tpu.reciprocal %102 {approx = true} : vector<8x1xf32> -> vector<8x1xf32>
    %104 = vector.broadcast %103 : vector<8x1xf32> to vector<8x8xf32>
    %105 = arith.mulf %100, %104 : vector<8x8xf32>
    %106 = arith.truncf %105 : vector<8x8xf32> to vector<8x8xbf16>
    %cst_51 = arith.constant dense<0.000000e+00> : vector<8x8xf32>
    %107 = tpu.matmul %106, %90, %cst_51 {dimension_numbers = #tpu.dot_dimension_numbers<[1], [0], [0], [1], [0, 0, 1, 1], [], []>} : vector<8x8xbf16>, vector<8x8xbf16>, vector<8x8xf32> -> vector<8x8xf32>
    %108 = arith.truncf %107 : vector<8x8xf32> to vector<8x8xbf16>
    %c16_52 = arith.constant 16 : index
    %c0_53 = arith.constant 0 : index
    %109 = vector.load %arg6[%c16_52, %c0_53] : memref<32x32xbf16, #tpu.memory_space<vmem>>, vector<8x32xbf16>
    %cst_54 = arith.constant dense<0.000000e+00> : vector<8x32xf32>
    %110 = tpu.matmul %108, %109, %cst_54 {dimension_numbers = #tpu.dot_dimension_numbers<[1], [0], [0], [1], [0, 0, 1, 1], [], []>} : vector<8x8xbf16>, vector<8x32xbf16>, vector<8x32xf32> -> vector<8x32xf32>
    %111 = arith.addf %87, %110 : vector<8x32xf32>
    %c0_55 = arith.constant 0 : index
    %c24 = arith.constant 24 : index
    %112 = vector.load %arg15[%c0_55, %c24] : memref<8x96xbf16, #tpu.memory_space<vmem>>, vector<8x8xbf16>
    %c0_56 = arith.constant 0 : index
    %c56 = arith.constant 56 : index
    %113 = vector.load %arg15[%c0_56, %c56] : memref<8x96xbf16, #tpu.memory_space<vmem>>, vector<8x8xbf16>
    %c0_57 = arith.constant 0 : index
    %c88 = arith.constant 88 : index
    %114 = vector.load %arg15[%c0_57, %c88] : memref<8x96xbf16, #tpu.memory_space<vmem>>, vector<8x8xbf16>
    %cst_58 = arith.constant dense<0.000000e+00> : vector<8x8xf32>
    %115 = tpu.matmul %112, %113, %cst_58 {dimension_numbers = #tpu.dot_dimension_numbers<[1], [1], [0], [0], [0, 0, 1, 0], [], []>} : vector<8x8xbf16>, vector<8x8xbf16>, vector<8x8xf32> -> vector<8x8xf32>
    %cst_59 = arith.constant 0.353553385 : f32
    %116 = vector.broadcast %cst_59 : f32 to vector<8x8xf32>
    %117 = arith.mulf %115, %116 : vector<8x8xf32>
    %cst_60 = arith.constant -1.000000e+30 : f32
    %118 = vector.broadcast %cst_60 : f32 to vector<8x8xf32>
    %119 = arith.select %38, %117, %118 : vector<8x8xi1>, vector<8x8xf32>
    %cst_61 = arith.constant dense<0xFF800000> : vector<8xf32>
    %120 = vector.multi_reduction <maximumf>, %119, %cst_61 [1] : vector<8x8xf32> to vector<8xf32>
    %121 = vector.shape_cast %120 : vector<8xf32> to vector<8x1xf32>
    %122 = vector.broadcast %121 : vector<8x1xf32> to vector<8x8xf32>
    %123 = arith.subf %119, %122 : vector<8x8xf32>
    %124 = math.exp %123 : vector<8x8xf32>
    %cst_62 = arith.constant dense<0.000000e+00> : vector<8xf32>
    %125 = vector.multi_reduction <add>, %124, %cst_62 [1] : vector<8x8xf32> to vector<8xf32>
    %126 = vector.shape_cast %125 : vector<8xf32> to vector<8x1xf32>
    %127 = tpu.reciprocal %126 {approx = true} : vector<8x1xf32> -> vector<8x1xf32>
    %128 = vector.broadcast %127 : vector<8x1xf32> to vector<8x8xf32>
    %129 = arith.mulf %124, %128 : vector<8x8xf32>
    %130 = arith.truncf %129 : vector<8x8xf32> to vector<8x8xbf16>
    %cst_63 = arith.constant dense<0.000000e+00> : vector<8x8xf32>
    %131 = tpu.matmul %130, %114, %cst_63 {dimension_numbers = #tpu.dot_dimension_numbers<[1], [0], [0], [1], [0, 0, 1, 1], [], []>} : vector<8x8xbf16>, vector<8x8xbf16>, vector<8x8xf32> -> vector<8x8xf32>
    %132 = arith.truncf %131 : vector<8x8xf32> to vector<8x8xbf16>
    %c24_64 = arith.constant 24 : index
    %c0_65 = arith.constant 0 : index
    %133 = vector.load %arg6[%c24_64, %c0_65] : memref<32x32xbf16, #tpu.memory_space<vmem>>, vector<8x32xbf16>
    %cst_66 = arith.constant dense<0.000000e+00> : vector<8x32xf32>
    %134 = tpu.matmul %132, %133, %cst_66 {dimension_numbers = #tpu.dot_dimension_numbers<[1], [0], [0], [1], [0, 0, 1, 1], [], []>} : vector<8x8xbf16>, vector<8x32xbf16>, vector<8x32xf32> -> vector<8x32xf32>
    %135 = arith.addf %111, %134 : vector<8x32xf32>
    %c0_67 = arith.constant 0 : index
    %c0_68 = arith.constant 0 : index
    %c0_69 = arith.constant 0 : index
    %136 = vector.load %arg1[%c0_67, %c0_68, %c0_69] : memref<1x8x32xf32, #tpu.memory_space<vmem>>, vector<1x8x32xf32>
    %137 = vector.shape_cast %136 : vector<1x8x32xf32> to vector<8x32xf32>
    %138 = arith.addf %137, %135 : vector<8x32xf32>
    %c0_70 = arith.constant 0 : index
    %c0_71 = arith.constant 0 : index
    %139 = vector.load %arg7[%c0_70, %c0_71] : memref<1x32xf32, #tpu.memory_space<vmem>>, vector<1x32xf32>
    %140 = vector.broadcast %139 : vector<1x32xf32> to vector<8x32xf32>
    %141 = arith.addf %138, %140 : vector<8x32xf32>
    %c0_72 = arith.constant 0 : index
    %c0_73 = arith.constant 0 : index
    %142 = vector.load %arg8[%c0_72, %c0_73] : memref<1x32xf32, #tpu.memory_space<vmem>>, vector<1x32xf32>
    %c0_74 = arith.constant 0 : index
    %c0_75 = arith.constant 0 : index
    %143 = vector.load %arg9[%c0_74, %c0_75] : memref<1x32xf32, #tpu.memory_space<vmem>>, vector<1x32xf32>
    %cst_76 = arith.constant dense<0.000000e+00> : vector<8xf32>
    %144 = vector.multi_reduction <add>, %141, %cst_76 [1] : vector<8x32xf32> to vector<8xf32>
    %145 = vector.shape_cast %144 : vector<8xf32> to vector<8x1xf32>
    %cst_77 = arith.constant 3.200000e+01 : f32
    %146 = vector.broadcast %cst_77 : f32 to vector<8x1xf32>
    %147 = arith.divf %145, %146 : vector<8x1xf32>
    %148 = vector.broadcast %147 : vector<8x1xf32> to vector<8x32xf32>
    %149 = arith.subf %141, %148 : vector<8x32xf32>
    %150 = arith.mulf %149, %149 : vector<8x32xf32>
    %cst_78 = arith.constant dense<0.000000e+00> : vector<8xf32>
    %151 = vector.multi_reduction <add>, %150, %cst_78 [1] : vector<8x32xf32> to vector<8xf32>
    %152 = vector.shape_cast %151 : vector<8xf32> to vector<8x1xf32>
    %cst_79 = arith.constant 3.200000e+01 : f32
    %153 = vector.broadcast %cst_79 : f32 to vector<8x1xf32>
    %154 = arith.divf %152, %153 : vector<8x1xf32>
    %155 = vector.broadcast %147 : vector<8x1xf32> to vector<8x32xf32>
    %156 = arith.subf %141, %155 : vector<8x32xf32>
    %cst_80 = arith.constant 9.99999974E-6 : f32
    %157 = vector.broadcast %cst_80 : f32 to vector<8x1xf32>
    %158 = arith.addf %154, %157 : vector<8x1xf32>
    %159 = math.rsqrt %158 : vector<8x1xf32>
    %160 = vector.broadcast %159 : vector<8x1xf32> to vector<8x32xf32>
    %161 = arith.mulf %156, %160 : vector<8x32xf32>
    %162 = vector.broadcast %142 : vector<1x32xf32> to vector<8x32xf32>
    %163 = arith.mulf %161, %162 : vector<8x32xf32>
    %164 = vector.broadcast %143 : vector<1x32xf32> to vector<8x32xf32>
    %165 = arith.addf %163, %164 : vector<8x32xf32>
    %166 = arith.truncf %165 : vector<8x32xf32> to vector<8x32xbf16>
    %c0_81 = arith.constant 0 : index
    %c0_82 = arith.constant 0 : index
    %167 = vector.load %arg10[%c0_81, %c0_82] : memref<32x128xbf16, #tpu.memory_space<vmem>>, vector<32x128xbf16>
    %cst_83 = arith.constant dense<0.000000e+00> : vector<8x128xf32>
    %168 = tpu.matmul %166, %167, %cst_83 {dimension_numbers = #tpu.dot_dimension_numbers<[1], [0], [0], [1], [0, 0, 1, 1], [], []>} : vector<8x32xbf16>, vector<32x128xbf16>, vector<8x128xf32> -> vector<8x128xf32>
    %c0_84 = arith.constant 0 : index
    %c0_85 = arith.constant 0 : index
    %169 = vector.load %arg11[%c0_84, %c0_85] : memref<1x128xf32, #tpu.memory_space<vmem>>, vector<1x128xf32>
    %170 = vector.broadcast %169 : vector<1x128xf32> to vector<8x128xf32>
    %171 = arith.addf %168, %170 : vector<8x128xf32>
    %cst_86 = arith.constant 5.000000e-01 : f32
    %172 = vector.broadcast %cst_86 : f32 to vector<8x128xf32>
    %173 = arith.mulf %172, %171 : vector<8x128xf32>
    %174 = arith.mulf %171, %171 : vector<8x128xf32>
    %175 = arith.mulf %171, %174 : vector<8x128xf32>
    %cst_87 = arith.constant 4.471500e-02 : f32
    %176 = vector.broadcast %cst_87 : f32 to vector<8x128xf32>
    %177 = arith.mulf %176, %175 : vector<8x128xf32>
    %178 = arith.addf %171, %177 : vector<8x128xf32>
    %cst_88 = arith.constant 0.797884583 : f32
    %179 = vector.broadcast %cst_88 : f32 to vector<8x128xf32>
    %180 = arith.mulf %179, %178 : vector<8x128xf32>
    %181 = math.tanh %180 : vector<8x128xf32>
    %cst_89 = arith.constant 1.000000e+00 : f32
    %182 = vector.broadcast %cst_89 : f32 to vector<8x128xf32>
    %183 = arith.addf %182, %181 : vector<8x128xf32>
    %184 = arith.mulf %173, %183 : vector<8x128xf32>
    %185 = arith.truncf %184 : vector<8x128xf32> to vector<8x128xbf16>
    %c0_90 = arith.constant 0 : index
    %c0_91 = arith.constant 0 : index
    %186 = vector.load %arg12[%c0_90, %c0_91] : memref<128x32xbf16, #tpu.memory_space<vmem>>, vector<128x32xbf16>
    %cst_92 = arith.constant dense<0.000000e+00> : vector<8x32xf32>
    %187 = tpu.matmul %185, %186, %cst_92 {dimension_numbers = #tpu.dot_dimension_numbers<[1], [0], [0], [1], [0, 0, 1, 1], [], []>} : vector<8x128xbf16>, vector<128x32xbf16>, vector<8x32xf32> -> vector<8x32xf32>
    %c0_93 = arith.constant 0 : index
    %c0_94 = arith.constant 0 : index
    %188 = vector.load %arg13[%c0_93, %c0_94] : memref<1x32xf32, #tpu.memory_space<vmem>>, vector<1x32xf32>
    %189 = vector.broadcast %188 : vector<1x32xf32> to vector<8x32xf32>
    %190 = arith.addf %187, %189 : vector<8x32xf32>
    %191 = arith.addf %141, %190 : vector<8x32xf32>
    %c0_95 = arith.constant 0 : index
    %c0_96 = arith.constant 0 : index
    %c0_97 = arith.constant 0 : index
    %192 = vector.load %arg14[%c0_95, %c0_96, %c0_97] : memref<1x8x32xf32, #tpu.memory_space<vmem>>, vector<1x8x32xf32>
    %193 = vector.shape_cast %192 : vector<1x8x32xf32> to vector<8x32xf32>
    %194 = vector.shape_cast %191 : vector<8x32xf32> to vector<1x8x32xf32>
    tpu.vector_store %arg14[%c0_95, %c0_96, %c0_97], %194 {strides = array<i32>} : memref<1x8x32xf32, #tpu.memory_space<vmem>>, vector<1x8x32xf32>,
    return
  }
  func.func @transform_0(%arg0: i32) -> (i32, i32, i32) {
    %c0_i32 = arith.constant 0 : i32
    %c0_i32_0 = arith.constant 0 : i32
    %c0_i32_1 = arith.constant 0 : i32
    return %arg0, %c0_i32, %c0_i32_0 : i32, i32, i32
  }
  func.func @transform_1(%arg0: i32) -> (i32, i32) {
    %c0_i32 = arith.constant 0 : i32
    %c0_i32_0 = arith.constant 0 : i32
    %c0_i32_1 = arith.constant 0 : i32
    return %c0_i32, %c0_i32_0 : i32, i32
  }
  func.func @transform_2(%arg0: i32) -> (i32, i32) {
    %c0_i32 = arith.constant 0 : i32
    %c0_i32_0 = arith.constant 0 : i32
    %c0_i32_1 = arith.constant 0 : i32
    return %c0_i32, %c0_i32_0 : i32, i32
  }
  func.func @transform_3(%arg0: i32) -> (i32, i32) {
    %c0_i32 = arith.constant 0 : i32
    %c0_i32_0 = arith.constant 0 : i32
    %c0_i32_1 = arith.constant 0 : i32
    return %c0_i32, %c0_i32_0 : i32, i32
  }
  func.func @transform_4(%arg0: i32) -> (i32, i32) {
    %c0_i32 = arith.constant 0 : i32
    %c0_i32_0 = arith.constant 0 : i32
    %c0_i32_1 = arith.constant 0 : i32
    return %c0_i32, %c0_i32_0 : i32, i32
  }
  func.func @transform_5(%arg0: i32) -> (i32, i32) {
    %c0_i32 = arith.constant 0 : i32
    %c0_i32_0 = arith.constant 0 : i32
    %c0_i32_1 = arith.constant 0 : i32
    return %c0_i32, %c0_i32_0 : i32, i32
  }
  func.func @transform_6(%arg0: i32) -> (i32, i32) {
    %c0_i32 = arith.constant 0 : i32
    %c0_i32_0 = arith.constant 0 : i32
    %c0_i32_1 = arith.constant 0 : i32
    return %c0_i32, %c0_i32_0 : i32, i32
  }
  func.func @transform_7(%arg0: i32) -> (i32, i32) {
    %c0_i32 = arith.constant 0 : i32
    %c0_i32_0 = arith.constant 0 : i32
    %c0_i32_1 = arith.constant 0 : i32
    return %c0_i32, %c0_i32_0 : i32, i32
  }
  func.func @transform_8(%arg0: i32) -> (i32, i32) {
    %c0_i32 = arith.constant 0 : i32
    %c0_i32_0 = arith.constant 0 : i32
    %c0_i32_1 = arith.constant 0 : i32
    return %c0_i32, %c0_i32_0 : i32, i32
  }
  func.func @transform_9(%arg0: i32) -> (i32, i32) {
    %c0_i32 = arith.constant 0 : i32
    %c0_i32_0 = arith.constant 0 : i32
    %c0_i32_1 = arith.constant 0 : i32
    return %c0_i32, %c0_i32_0 : i32, i32
  }
  func.func @transform_10(%arg0: i32) -> (i32, i32) {
    %c0_i32 = arith.constant 0 : i32
    %c0_i32_0 = arith.constant 0 : i32
    %c0_i32_1 = arith.constant 0 : i32
    return %c0_i32, %c0_i32_0 : i32, i32
  }
  func.func @transform_11(%arg0: i32) -> (i32, i32) {
    %c0_i32 = arith.constant 0 : i32
    %c0_i32_0 = arith.constant 0 : i32
    %c0_i32_1 = arith.constant 0 : i32
    return %c0_i32, %c0_i32_0 : i32, i32
  }
  func.func @transform_12(%arg0: i32) -> (i32, i32) {
    %c0_i32 = arith.constant 0 : i32
    %c0_i32_0 = arith.constant 0 : i32
    %c0_i32_1 = arith.constant 0 : i32
    return %c0_i32, %c0_i32_0 : i32, i32
  }
  func.func @transform_13(%arg0: i32) -> (i32, i32, i32) {
    %c0_i32 = arith.constant 0 : i32
    %c0_i32_0 = arith.constant 0 : i32
    %c0_i32_1 = arith.constant 0 : i32
    return %arg0, %c0_i32, %c0_i32_0 : i32, i32, i32
  }
}

</mosaic_0001>

<llo_original>
// kernel: tpu_custom_call.1
$region0: #{tpu_custom_call.1}
  #allocation0 [shape = 'u32[]', space=smem, size = 0x4, offset = 0x4, fixed_abs, tag = 'smem constant byte address 0x4 - core index']
  #allocation1 [shape = 'u32[144,128]{1,0:T(1,128)}', space=vmem, size = 0x12000, scoped, tag = 'internal scratch']
  #allocation2 [shape = 'bf16[8,96]{1,0:T(8,128)(2,1)}', space=vmem, size = 0x800, scoped, tag = 'scratch operand']
  %s0 = inlined_call_operand.vmem [shape: f32[2,8,32], index: 0, kind: input, shape index: {}]
  %s1 = inlined_call_operand.vmem [shape: f32[1,32], index: 1, kind: input, shape index: {}]
  %s2 = inlined_call_operand.vmem [shape: f32[1,32], index: 2, kind: input, shape index: {}]
  %s3 = inlined_call_operand.vmem [shape: bf16[32,96], index: 3, kind: input, shape index: {}]
  %s4 = inlined_call_operand.vmem [shape: f32[1,96], index: 4, kind: input, shape index: {}]
  %s5 = inlined_call_operand.vmem [shape: bf16[32,32], index: 5, kind: input, shape index: {}]
  %s6 = inlined_call_operand.vmem [shape: f32[1,32], index: 6, kind: input, shape index: {}]
  %s7 = inlined_call_operand.vmem [shape: f32[1,32], index: 7, kind: input, shape index: {}]
  %s8 = inlined_call_operand.vmem [shape: f32[1,32], index: 8, kind: input, shape index: {}]
  %s9 = inlined_call_operand.vmem [shape: bf16[32,128], index: 9, kind: input, shape index: {}]
  %s10 = inlined_call_operand.vmem [shape: f32[1,128], index: 10, kind: input, shape index: {}]
  %s11 = inlined_call_operand.vmem [shape: bf16[128,32], index: 11, kind: input, shape index: {}]
  %s12 = inlined_call_operand.vmem [shape: f32[1,32], index: 12, kind: input, shape index: {}]
  %s13 = inlined_call_operand.hbm [shape: f32[2,8,32], index: 13, kind: output, shape index: {}]
  %s14 = sld [smem:[#allocation0]]
  $region85: #{tpu_custom_call.1} parent=0
    _
  %s16 = ssub.s32 1, %s14
  %s17 = scalar_select 0, %s16, %s14
  $region1: #{tpu_custom_call.1} parent=0
    #allocation3 [shape = 'u8[8192]{0}', space=vmem, size = 0x2000, scoped, tag = 'output window, operand 0']
    #allocation4 [shape = 's32[2]{0}', space=sflag, size = 0x8, scoped, tag = 'scoped memory for tpu_custom_call.1']
    %18 = vsyncpa [#allocation4], 0
    %s19 = scalar_lea.sflag [#allocation4], 1
    %20 = vsyncpa %s19, 0
    loop: start=0, step=1, limit=4
    $region2: #{tpu_custom_call.1} parent=1 // loop_pre_header
      _
    $region3: #{tpu_custom_call.1} parent=1 // loop_header
      %s22 = sphi 0, %s26
      %p23 = scmp.ge.s32.totalorder %s22, 4
      %s32 = sphi 0, %s34
      %s35 = sphi 0, %s32
      %s36 = sphi 0, %s35
      %s52 = sphi 0, %s36
      %s56 = sphi 0, %s56
      %s58 = sphi 0, %s56
      %s59 = sphi 0, %s58
      %s73 = sphi 0, %s59
      %s77 = sphi 0, %s77
      %s79 = sphi 0, %s77
      %s80 = sphi 0, %s79
      %s94 = sphi 0, %s80
      %s98 = sphi 0, %s98
      %s100 = sphi 0, %s98
      %s101 = sphi 0, %s100
      %s115 = sphi 0, %s101
      %s119 = sphi 0, %s119
      %s121 = sphi 0, %s119
      %s122 = sphi 0, %s121
      %s136 = sphi 0, %s122
      %s140 = sphi 0, %s140
      %s142 = sphi 0, %s140
      %s143 = sphi 0, %s142
      %s157 = sphi 0, %s143
      %s161 = sphi 0, %s161
      %s163 = sphi 0, %s161
      %s164 = sphi 0, %s163
      %s178 = sphi 0, %s164
      %s182 = sphi 0, %s182
      %s184 = sphi 0, %s182
      %s185 = sphi 0, %s184
      %s199 = sphi 0, %s185
      %s203 = sphi 0, %s203
      %s205 = sphi 0, %s203
      %s206 = sphi 0, %s205
      %s220 = sphi 0, %s206
      %s224 = sphi 0, %s224
      %s226 = sphi 0, %s224
      %s227 = sphi 0, %s226
      %s241 = sphi 0, %s227
      %s245 = sphi 0, %s245
      %s247 = sphi 0, %s245
      %s248 = sphi 0, %s247
      %s262 = sphi 0, %s248
      %s266 = sphi 0, %s266
      %s268 = sphi 0, %s266
      %s269 = sphi 0, %s268
      %s283 = sphi 0, %s269
      %s287 = sphi 0, %s287
      %s289 = sphi 0, %s287
      %s290 = sphi 0, %s289
      %s304 = sphi 0, %s290
      %s310 = sphi 0, %s312
      %s313 = sphi 0, %s310
      %s314 = sphi 0, %s313
      %s330 = sphi 0, %s314
    $region4: #{tpu_custom_call.1} parent=1 // loop_header_branch
      %25 = sbr.rel (%p23) target = $region8
    $region5: #{tpu_custom_call.1} parent=1 // loop_body
      %s27 = ssub.s32 %s22, 1
      %s28 = ssub.s32 %s22, 2
      %s29 = sadd.s32 %s22, 1
      %s30 = ssub.s32 %s22, %s29
      %p31 = scmp.eq.s32.totalorder %s30, 0
      %s33 = sadd.s32 %s32, 1
      %s34 = scalar_select %p31, %s32, %s33
      %p37 = pneg %p31
      %p38 = scmp.eq.s32.totalorder %s22, 1
      %p39 = por %p37, %p38
      %p40 = scmp.ne.s32.totalorder %s32, %s35
      %p41 = scmp.eq.s32.totalorder %s22, 0
      %p42 = por %p40, %p41
      %p43 = scmp.ne.s32.totalorder %s32, %s35
      %p44 = scmp.eq.s32.totalorder %s27, 1
      %p45 = por %p43, %p44
      %p46 = scmp.ne.s32.totalorder %s35, %s36
      %p47 = scmp.eq.s32.totalorder %s27, 0
      %p48 = por %p46, %p47
      %p49 = scmp.ne.s32.totalorder %s35, %s36
      %p50 = scmp.eq.s32.totalorder %s28, 1
      %p51 = por %p49, %p50
      %p53 = scmp.ne.s32.totalorder %s36, %s52
      %p54 = scmp.eq.s32.totalorder %s28, 0
      %p55 = por %p53, %p54
      %s57 = sadd.s32 %s56, 1
      %p60 = scmp.eq.s32.totalorder %s22, 1
      %p61 = scmp.ne.s32.totalorder %s56, %s58
      %p62 = scmp.eq.s32.totalorder %s22, 0
      %p63 = por %p61, %p62
      %p64 = scmp.ne.s32.totalorder %s56, %s58
      %p65 = scmp.eq.s32.totalorder %s27, 1
      %p66 = por %p64, %p65
      %p67 = scmp.ne.s32.totalorder %s58, %s59
      %p68 = scmp.eq.s32.totalorder %s27, 0
      %p69 = por %p67, %p68
      %p70 = scmp.ne.s32.totalorder %s58, %s59
      %p71 = scmp.eq.s32.totalorder %s28, 1
      %p72 = por %p70, %p71
      %p74 = scmp.ne.s32.totalorder %s59, %s73
      %p75 = scmp.eq.s32.totalorder %s28, 0
      %p76 = por %p74, %p75
      %s78 = sadd.s32 %s77, 1
      %p81 = scmp.eq.s32.totalorder %s22, 1
      %p82 = scmp.ne.s32.totalorder %s77, %s79
      %p83 = scmp.eq.s32.totalorder %s22, 0
      %p84 = por %p82, %p83
      %p85 = scmp.ne.s32.totalorder %s77, %s79
      %p86 = scmp.eq.s32.totalorder %s27, 1
      %p87 = por %p85, %p86
      %p88 = scmp.ne.s32.totalorder %s79, %s80
      %p89 = scmp.eq.s32.totalorder %s27, 0
      %p90 = por %p88, %p89
      %p91 = scmp.ne.s32.totalorder %s79, %s80
      %p92 = scmp.eq.s32.totalorder %s28, 1
      %p93 = por %p91, %p92
      %p95 = scmp.ne.s32.totalorder %s80, %s94
      %p96 = scmp.eq.s32.totalorder %s28, 0
      %p97 = por %p95, %p96
      %s99 = sadd.s32 %s98, 1
      %p102 = scmp.eq.s32.totalorder %s22, 1
      %p103 = scmp.ne.s32.totalorder %s98, %s100
      %p104 = scmp.eq.s32.totalorder %s22, 0
      %p105 = por %p103, %p104
      %p106 = scmp.ne.s32.totalorder %s98, %s100
      %p107 = scmp.eq.s32.totalorder %s27, 1
      %p108 = por %p106, %p107
      %p109 = scmp.ne.s32.totalorder %s100, %s101
      %p110 = scmp.eq.s32.totalorder %s27, 0
      %p111 = por %p109, %p110
      %p112 = scmp.ne.s32.totalorder %s100, %s101
      %p113 = scmp.eq.s32.totalorder %s28, 1
      %p114 = por %p112, %p113
      %p116 = scmp.ne.s32.totalorder %s101, %s115
      %p117 = scmp.eq.s32.totalorder %s28, 0
      %p118 = por %p116, %p117
      %s120 = sadd.s32 %s119, 1
      %p123 = scmp.eq.s32.totalorder %s22, 1
      %p124 = scmp.ne.s32.totalorder %s119, %s121
      %p125 = scmp.eq.s32.totalorder %s22, 0
      %p126 = por %p124, %p125
      %p127 = scmp.ne.s32.totalorder %s119, %s121
      %p128 = scmp.eq.s32.totalorder %s27, 1
      %p129 = por %p127, %p128
      %p130 = scmp.ne.s32.totalorder %s121, %s122
      %p131 = scmp.eq.s32.totalorder %s27, 0
      %p132 = por %p130, %p131
      %p133 = scmp.ne.s32.totalorder %s121, %s122
      %p134 = scmp.eq.s32.totalorder %s28, 1
      %p135 = por %p133, %p134
      %p137 = scmp.ne.s32.totalorder %s122, %s136
      %p138 = scmp.eq.s32.totalorder %s28, 0
      %p139 = por %p137, %p138
      %s141 = sadd.s32 %s140, 1
      %p144 = scmp.eq.s32.totalorder %s22, 1
      %p145 = scmp.ne.s32.totalorder %s140, %s142
      %p146 = scmp.eq.s32.totalorder %s22, 0
      %p147 = por %p145, %p146
      %p148 = scmp.ne.s32.totalorder %s140, %s142
      %p149 = scmp.eq.s32.totalorder %s27, 1
      %p150 = por %p148, %p149
      %p151 = scmp.ne.s32.totalorder %s142, %s143
      %p152 = scmp.eq.s32.totalorder %s27, 0
      %p153 = por %p151, %p152
      %p154 = scmp.ne.s32.totalorder %s142, %s143
      %p155 = scmp.eq.s32.totalorder %s28, 1
      %p156 = por %p154, %p155
      %p158 = scmp.ne.s32.totalorder %s143, %s157
      %p159 = scmp.eq.s32.totalorder %s28, 0
      %p160 = por %p158, %p159
      %s162 = sadd.s32 %s161, 1
      %p165 = scmp.eq.s32.totalorder %s22, 1
      %p166 = scmp.ne.s32.totalorder %s161, %s163
      %p167 = scmp.eq.s32.totalorder %s22, 0
      %p168 = por %p166, %p167
      %p169 = scmp.ne.s32.totalorder %s161, %s163
      %p170 = scmp.eq.s32.totalorder %s27, 1
      %p171 = por %p169, %p170
      %p172 = scmp.ne.s32.totalorder %s163, %s164
      %p173 = scmp.eq.s32.totalorder %s27, 0
      %p174 = por %p172, %p173
      %p175 = scmp.ne.s32.totalorder %s163, %s164
      %p176 = scmp.eq.s32.totalorder %s28, 1
      %p177 = por %p175, %p176
      %p179 = scmp.ne.s32.totalorder %s164, %s178
      %p180 = scmp.eq.s32.totalorder %s28, 0
      %p181 = por %p179, %p180
      %s183 = sadd.s32 %s182, 1
      %p186 = scmp.eq.s32.totalorder %s22, 1
      %p187 = scmp.ne.s32.totalorder %s182, %s184
      %p188 = scmp.eq.s32.totalorder %s22, 0
      %p189 = por %p187, %p188
      %p190 = scmp.ne.s32.totalorder %s182, %s184
      %p191 = scmp.eq.s32.totalorder %s27, 1
      %p192 = por %p190, %p191
      %p193 = scmp.ne.s32.totalorder %s184, %s185
      %p194 = scmp.eq.s32.totalorder %s27, 0
      %p195 = por %p193, %p194
      %p196 = scmp.ne.s32.totalorder %s184, %s185
      %p197 = scmp.eq.s32.totalorder %s28, 1
      %p198 = por %p196, %p197
      %p200 = scmp.ne.s32.totalorder %s185, %s199
      %p201 = scmp.eq.s32.totalorder %s28, 0
      %p202 = por %p200, %p201
      %s204 = sadd.s32 %s203, 1
      %p207 = scmp.eq.s32.totalorder %s22, 1
      %p208 = scmp.ne.s32.totalorder %s203, %s205
      %p209 = scmp.eq.s32.totalorder %s22, 0
      %p210 = por %p208, %p209
      %p211 = scmp.ne.s32.totalorder %s203, %s205
      %p212 = scmp.eq.s32.totalorder %s27, 1
      %p213 = por %p211, %p212
      %p214 = scmp.ne.s32.totalorder %s205, %s206
      %p215 = scmp.eq.s32.totalorder %s27, 0
      %p216 = por %p214, %p215
      %p217 = scmp.ne.s32.totalorder %s205, %s206
      %p218 = scmp.eq.s32.totalorder %s28, 1
      %p219 = por %p217, %p218
      %p221 = scmp.ne.s32.totalorder %s206, %s220
      %p222 = scmp.eq.s32.totalorder %s28, 0
      %p223 = por %p221, %p222
      %s225 = sadd.s32 %s224, 1
      %p228 = scmp.eq.s32.totalorder %s22, 1
      %p229 = scmp.ne.s32.totalorder %s224, %s226
      %p230 = scmp.eq.s32.totalorder %s22, 0
      %p231 = por %p229, %p230
      %p232 = scmp.ne.s32.totalorder %s224, %s226
      %p233 = scmp.eq.s32.totalorder %s27, 1
      %p234 = por %p232, %p233
      %p235 = scmp.ne.s32.totalorder %s226, %s227
      %p236 = scmp.eq.s32.totalorder %s27, 0
      %p237 = por %p235, %p236
      %p238 = scmp.ne.s32.totalorder %s226, %s227
      %p239 = scmp.eq.s32.totalorder %s28, 1
      %p240 = por %p238, %p239
      %p242 = scmp.ne.s32.totalorder %s227, %s241
      %p243 = scmp.eq.s32.totalorder %s28, 0
      %p244 = por %p242, %p243
      %s246 = sadd.s32 %s245, 1
      %p249 = scmp.eq.s32.totalorder %s22, 1
      %p250 = scmp.ne.s32.totalorder %s245, %s247
      %p251 = scmp.eq.s32.totalorder %s22, 0
      %p252 = por %p250, %p251
      %p253 = scmp.ne.s32.totalorder %s245, %s247
      %p254 = scmp.eq.s32.totalorder %s27, 1
      %p255 = por %p253, %p254
      %p256 = scmp.ne.s32.totalorder %s247, %s248
      %p257 = scmp.eq.s32.totalorder %s27, 0
      %p258 = por %p256, %p257
      %p259 = scmp.ne.s32.totalorder %s247, %s248
      %p260 = scmp.eq.s32.totalorder %s28, 1
      %p261 = por %p259, %p260
      %p263 = scmp.ne.s32.totalorder %s248, %s262
      %p264 = scmp.eq.s32.totalorder %s28, 0
      %p265 = por %p263, %p264
      %s267 = sadd.s32 %s266, 1
      %p270 = scmp.eq.s32.totalorder %s22, 1
      %p271 = scmp.ne.s32.totalorder %s266, %s268
      %p272 = scmp.eq.s32.totalorder %s22, 0
      %p273 = por %p271, %p272
      %p274 = scmp.ne.s32.totalorder %s266, %s268
      %p275 = scmp.eq.s32.totalorder %s27, 1
      %p276 = por %p274, %p275
      %p277 = scmp.ne.s32.totalorder %s268, %s269
      %p278 = scmp.eq.s32.totalorder %s27, 0
      %p279 = por %p277, %p278
      %p280 = scmp.ne.s32.totalorder %s268, %s269
      %p281 = scmp.eq.s32.totalorder %s28, 1
      %p282 = por %p280, %p281
      %p284 = scmp.ne.s32.totalorder %s269, %s283
      %p285 = scmp.eq.s32.totalorder %s28, 0
      %p286 = por %p284, %p285
      %s288 = sadd.s32 %s287, 1
      %p291 = scmp.eq.s32.totalorder %s22, 1
      %p292 = scmp.ne.s32.totalorder %s287, %s289
      %p293 = scmp.eq.s32.totalorder %s22, 0
      %p294 = por %p292, %p293
      %p295 = scmp.ne.s32.totalorder %s287, %s289
      %p296 = scmp.eq.s32.totalorder %s27, 1
      %p297 = por %p295, %p296
      %p298 = scmp.ne.s32.totalorder %s289, %s290
      %p299 = scmp.eq.s32.totalorder %s27, 0
      %p300 = por %p298, %p299
      %p301 = scmp.ne.s32.totalorder %s289, %s290
      %p302 = scmp.eq.s32.totalorder %s28, 1
      %p303 = por %p301, %p302
      %p305 = scmp.ne.s32.totalorder %s290, %s304
      %p306 = scmp.eq.s32.totalorder %s28, 0
      %p307 = por %p305, %p306
      %s308 = ssub.s32 %s22, %s29
      %p309 = scmp.eq.s32.totalorder %s308, 0
      %s311 = sadd.s32 %s310, 1
      %s312 = scalar_select %p309, %s310, %s311
      %p315 = pneg %p309
      %p316 = scmp.eq.s32.totalorder %s22, 1
      %p317 = por %p315, %p316
      %p318 = scmp.ne.s32.totalorder %s310, %s313
      %p319 = scmp.eq.s32.totalorder %s22, 0
      %p320 = por %p318, %p319
      %p321 = scmp.ne.s32.totalorder %s310, %s313
      %p322 = scmp.eq.s32.totalorder %s27, 1
      %p323 = por %p321, %p322
      %p324 = scmp.ne.s32.totalorder %s313, %s314
      %p325 = scmp.eq.s32.totalorder %s27, 0
      %p326 = por %p324, %p325
      %p327 = scmp.ne.s32.totalorder %s313, %s314
      %p328 = scmp.eq.s32.totalorder %s28, 1
      %p329 = por %p327, %p328
      %p331 = scmp.ne.s32.totalorder %s314, %s330
      %p332 = scmp.eq.s32.totalorder %s28, 0
      %p333 = por %p331, %p332
      %p334 = scmp.le.s32.totalorder 1, %s22
      %p335 = scmp.lt.s32.totalorder %s22, 3
      %p336 = pnand %p334, %p335
      %p337 = pneg %p336
      // Predicated region
      $region9: #{tpu_custom_call.1} parent=5 // pred_check
        _
      $region10: #{tpu_custom_call.1} parent=5 // pred_check_branch
        %339 = sbr.rel (%p336) target = $region12
      $region11: #{tpu_custom_call.1} parent=5 // pred_region
        %s340 = ssub.s32 %s22, 1
        // Predicated region
        $region13: #{tpu_custom_call.1} parent=11 // pred_check
          %p341 = pneg %p69
        $region14: #{tpu_custom_call.1} parent=11 // pred_check_branch
          %343 = sbr.rel (%p341) target = $region16
        $region15: #{tpu_custom_call.1} parent=11 // pred_region
          _
        $region16: #{tpu_custom_call.1} parent=11 // pred_fallthru
          _
        // Predicated region
        $region17: #{tpu_custom_call.1} parent=11 // pred_check
          %p344 = pneg %p90
        $region18: #{tpu_custom_call.1} parent=11 // pred_check_branch
          %346 = sbr.rel (%p344) target = $region20
        $region19: #{tpu_custom_call.1} parent=11 // pred_region
          _
        $region20: #{tpu_custom_call.1} parent=11 // pred_fallthru
          _
        // Predicated region
        $region21: #{tpu_custom_call.1} parent=11 // pred_check
          %p347 = pneg %p111
        $region22: #{tpu_custom_call.1} parent=11 // pred_check_branch
          %349 = sbr.rel (%p347) target = $region24
        $region23: #{tpu_custom_call.1} parent=11 // pred_region
          _
        $region24: #{tpu_custom_call.1} parent=11 // pred_fallthru
          _
        // Predicated region
        $region25: #{tpu_custom_call.1} parent=11 // pred_check
          %p350 = pneg %p132
        $region26: #{tpu_custom_call.1} parent=11 // pred_check_branch
          %352 = sbr.rel (%p350) target = $region28
        $region27: #{tpu_custom_call.1} parent=11 // pred_region
          _
        $region28: #{tpu_custom_call.1} parent=11 // pred_fallthru
          _
        // Predicated region
        $region29: #{tpu_custom_call.1} parent=11 // pred_check
          %p353 = pneg %p153
        $region30: #{tpu_custom_call.1} parent=11 // pred_check_branch
          %355 = sbr.rel (%p353) target = $region32
        $region31: #{tpu_custom_call.1} parent=11 // pred_region
          _
        $region32: #{tpu_custom_call.1} parent=11 // pred_fallthru
          _
        // Predicated region
        $region33: #{tpu_custom_call.1} parent=11 // pred_check
          %p356 = pneg %p174
        $region34: #{tpu_custom_call.1} parent=11 // pred_check_branch
          %358 = sbr.rel (%p356) target = $region36
        $region35: #{tpu_custom_call.1} parent=11 // pred_region
          _
        $region36: #{tpu_custom_call.1} parent=11 // pred_fallthru
          _
        // Predicated region
        $region37: #{tpu_custom_call.1} parent=11 // pred_check
          %p359 = pneg %p195
        $region38: #{tpu_custom_call.1} parent=11 // pred_check_branch
          %361 = sbr.rel (%p359) target = $region40
        $region39: #{tpu_custom_call.1} parent=11 // pred_region
          _
        $region40: #{tpu_custom_call.1} parent=11 // pred_fallthru
          _
        // Predicated region
        $region41: #{tpu_custom_call.1} parent=11 // pred_check
          %p362 = pneg %p216
        $region42: #{tpu_custom_call.1} parent=11 // pred_check_branch
          %364 = sbr.rel (%p362) target = $region44
        $region43: #{tpu_custom_call.1} parent=11 // pred_region
          _
        $region44: #{tpu_custom_call.1} parent=11 // pred_fallthru
          _
        // Predicated region
        $region45: #{tpu_custom_call.1} parent=11 // pred_check
          %p365 = pneg %p237
        $region46: #{tpu_custom_call.1} parent=11 // pred_check_branch
          %367 = sbr.rel (%p365) target = $region48
        $region47: #{tpu_custom_call.1} parent=11 // pred_region
          _
        $region48: #{tpu_custom_call.1} parent=11 // pred_fallthru
          _
        // Predicated region
        $region49: #{tpu_custom_call.1} parent=11 // pred_check
          %p368 = pneg %p258
        $region50: #{tpu_custom_call.1} parent=11 // pred_check_branch
          %370 = sbr.rel (%p368) target = $region52
        $region51: #{tpu_custom_call.1} parent=11 // pred_region
          _
        $region52: #{tpu_custom_call.1} parent=11 // pred_fallthru
          _
        // Predicated region
        $region53: #{tpu_custom_call.1} parent=11 // pred_check
          %p371 = pneg %p279
        $region54: #{tpu_custom_call.1} parent=11 // pred_check_branch
          %373 = sbr.rel (%p371) target = $region56
        $region55: #{tpu_custom_call.1} parent=11 // pred_region
          _
        $region56: #{tpu_custom_call.1} parent=11 // pred_fallthru
          _
        // Predicated region
        $region57: #{tpu_custom_call.1} parent=11 // pred_check
          %p374 = pneg %p300
        $region58: #{tpu_custom_call.1} parent=11 // pred_check_branch
          %376 = sbr.rel (%p374) target = $region60
        $region59: #{tpu_custom_call.1} parent=11 // pred_region
          _
        $region60: #{tpu_custom_call.1} parent=11 // pred_fallthru
          _
      $region12: #{tpu_custom_call.1} parent=5 // pred_fallthru
        _
      %p377 = scmp.lt.s32.totalorder %s22, 2
      // Predicated region
      $region61: #{tpu_custom_call.1} parent=5 // pred_check
        %p378 = pneg %p377
      $region62: #{tpu_custom_call.1} parent=5 // pred_check_branch
        %380 = sbr.rel (%p378) target = $region64
      $region63: #{tpu_custom_call.1} parent=5 // pred_region
        // Predicated region
        $region65: #{tpu_custom_call.1} parent=63 // pred_check
          %p381 = pneg %p42
        $region66: #{tpu_custom_call.1} parent=63 // pred_check_branch
          %383 = sbr.rel (%p381) target = $region68
        $region67: #{tpu_custom_call.1} parent=63 // pred_region
          %p384 = scmp.lt.s32.totalorder %s22, 1
          %s385 = scalar_select %p384, %s22, 1
          %s386 = smul.addr %s385, 8
          %s387 = scalar_lea.vmem %s0, %s386
        $region68: #{tpu_custom_call.1} parent=63 // pred_fallthru
          _
      $region64: #{tpu_custom_call.1} parent=5 // pred_fallthru
        _
      %p388 = scmp.le.s32.totalorder 1, %s22
      %p389 = scmp.lt.s32.totalorder %s22, 3
      %p390 = pnand %p388, %p389
      %p391 = pneg %p390
      // Predicated region
      $region69: #{tpu_custom_call.1} parent=5 // pred_check
        _
      $region70: #{tpu_custom_call.1} parent=5 // pred_check_branch
        %393 = sbr.rel (%p390) target = $region72
      $region71: #{tpu_custom_call.1} parent=5 // pred_region
        %s394 = ssub.s32 %s22, 1
        %p395 = scmp.lt.s32.totalorder %s27, 1
        %s396 = scalar_select %p395, %s27, 1
        %s397 = smul.addr %s396, 8
        %s398 = scalar_lea.vmem %s0, %s397
        %p399 = pneg %p48
        %p400 = pneg %p45
        %p401 = pneg %p69
        %p402 = pneg %p66
        %p403 = pneg %p90
        %p404 = pneg %p87
        %p405 = pneg %p111
        %p406 = pneg %p108
        %p407 = pneg %p132
        %p408 = pneg %p129
        %p409 = pneg %p153
        %p410 = pneg %p150
        %p411 = pneg %p174
        %p412 = pneg %p171
        %p413 = pneg %p195
        %p414 = pneg %p192
        %p415 = pneg %p216
        %p416 = pneg %p213
        %p417 = pneg %p237
        %p418 = pneg %p234
        %p419 = pneg %p258
        %p420 = pneg %p255
        %p421 = pneg %p279
        %p422 = pneg %p276
        %p423 = pneg %p300
        %p424 = pneg %p297
        %p425 = pneg %p326
        %p426 = pneg %p323
        %s427 = sand.u32 %s313, 1
        %s428 = scalar_lea.sflag [#allocation4], %s427
        %s429 = sand.u32 %s313, 1
        %s430 = smul.addr %s429, 8
        %s431 = scalar_lea.vmem [#allocation3], %s430
        %p432 = scmp.lt.s32.totalorder %s27, 1
        %s433 = scalar_select %p432, %s27, 1
        %s434 = smul.addr %s433, 8
        %s435 = scalar_lea.vmem %s0, %s434
        %v437 = vld [vmem:[%s435] sm:$0xff]
        %v438 = vld [vmem:[%s1] sm:$0x1]
        %v439 = vld [vmem:[%s2] sm:$0x1]
        %vm440 = vcmask 261120
        %v441 = vsel %vm440, %v437, 0.0
        %442 = vadd.xlane.f32.xlu0 %v441
        %v443 = vpop.xlane.xlu0 %442
        %v444 = vrcp.pop 32.0
        %v445 = vmul.f32 %v443, %v444
        %v446 = vsub.f32 %v437, %v445
        %v447 = vmul.f32 %v446, %v446
        %v448 = vsel %vm440, %v447, 0.0
        %449 = vadd.xlane.f32.xlu0 %v448
        %v450 = vpop.xlane.xlu0 %449
        %v451 = vmul.f32 %v450, %v444
        %v452 = vadd.f32 %v451, 1e-05
        %v453 = vrsqrt.pop %v452
        %v454 = vmul.f32 %v446, %v453
        %v456 = vlaneseq
        %v457 = vshrl.u32 %v456, 7
        %v458 = vsub.s32 0, %v457
        %v459 = vrot.slane %v438, %v458
        %v461 = vmul.f32 %v454, %v459
        %v463 = vlaneseq
        %v464 = vshrl.u32 %v463, 7
        %v465 = vsub.s32 0, %v464
        %v466 = vrot.slane %v439, %v465
        %v468 = vadd.f32 %v461, %v466
        %v469 = vpack.c.bf16 %v468, %v468
        %v470 = vld [vmem:[%s3] sm:$0xf]
        %v471 = vld [vmem:[%s3 + $0x4] sm:$0xf]
        %v472 = vld [vmem:[%s3 + $0x8] sm:$0xf]
        %v473 = vld [vmem:[%s3 + $0xc] sm:$0xf]
        %v474 = vld [vmem:[%s4] sm:$0x1]
        %v476 = vlaneseq
        %v477 = vshrl.u32 %v476, 7
        %v478 = vsub.s32 0, %v477
        %v479 = vrot.slane %v474, %v478
        %v485 = vunpack.c.l.b16 %v470
        %v486 = vunpack.c.l.b16 %v471
        %v487 = vunpack.c.l.b16 %v472
        %v488 = vunpack.c.l.b16 %v473
        %v489 = vpack.c.b16 %v486, %v485
        %v490 = vpack.c.b16 %v488, %v487
        %v494 = vsel %vm440, %v469, 0
        %496 = vmatprep.subr.bf16.mxu0 0
        %497 = vmatpush1.bf16.msra.mxu0 0
        %498 = vmatprep.subr.bf16.mxu0 0
        %499 = vmatpush1.bf16.msra.mxu0 0
        %500 = vmatprep.subr.bf16.mxu0 0
        %501 = vmatpush1.bf16.msra.mxu0 0
        %502 = vmatprep.subr.bf16.mxu0 0
        %503 = vmatpush1.bf16.msra.mxu0 0
        %504 = vmatprep.subr.bf16.mxu0 0
        %505 = vmatpush1.bf16.msra.mxu0 0
        %506 = vmatprep.subr.bf16.mxu0 0
        %507 = vmatpush1.bf16.msra.mxu0 0
        %508 = vmatprep.subr.bf16.mxu0 0
        %509 = vmatpush1.bf16.msra.mxu0 %v490
        %510 = vmatprep.subr.bf16.mxu0 0
        %511 = vmatpush1.bf16.msra.mxu0 %v489
        %512 = vmatprep.subr.bf16.mxu0 0
        %513 = vmatpush2.bf16.msra.mxu0 0
        %514 = vmatprep.subr.bf16.mxu0 0
        %515 = vmatpush2.bf16.msra.mxu0 0
        %516 = vmatprep.subr.bf16.mxu0 0
        %517 = vmatpush2.bf16.msra.mxu0 0
        %518 = vmatprep.subr.bf16.mxu0 0
        %519 = vmatpush2.bf16.msra.mxu0 0
        %520 = vmatprep.subr.bf16.mxu0 0
        %521 = vmatpush2.bf16.msra.mxu0 0
        %522 = vmatprep.subr.bf16.mxu0 0
        %523 = vmatpush2.bf16.msra.mxu0 0
        %524 = vmatprep.subr.bf16.mxu0 0
        %525 = vmatpush2.bf16.msra.mxu0 0
        %526 = vmatprep.subr.bf16.mxu0 0
        %527 = vmatpush2.bf16.msra.mxu0 0
        %528 = vmatprep.mubr.bf16.mxu0 0
        %529 = vmatmul.mubr.bf16.gmra.mxu0 %v494
        %v530 = vpop.f32.mrf.mxu0
        %v531 = vadd.f32 %v479, %v530
        %v532 = vpop.f32.mrf.mxu0
        %v533 = vpop.f32.mrf.mxu0
        %v534 = vpop.f32.mrf.mxu0
        %535 = vdwg.mxu0
        %v536 = vpack.c.bf16 %v531, %v531
        %vm537 = vcmask 781312
        %538 = vst.msk [vmem:[#allocation2] sm:$0xf] %vm537, %v536
        %v539 = vlaneseq
        %v540 = vshrl.u32 %v539, 7
        %v541 = vlaneseq
        %v542 = vand.u32 %v541, 127
        %vm543 = vcmp.ge.s32.totalorder %v540, %v542
        %v544 = vld [vmem:[#allocation2] sm:$0xf]
        %v546 = vunpack.c.l.b16 %v544
        %v547 = vpack.c.b16 %v546, %v546
        %548 = vrot.lane.b32.xlu0 %v547, 96
        %v549 = vpop.permute.xlu0 %548
        %vm550 = vcmask 64512
        %v552 = vsel %vm550, %v544, 0
        %v555 = vsel %vm550, %v549, 0
        %557 = vmatprep.subr.bf16.mxu0 0
        %558 = vmatpush1.bf16.xpose.msra.mxu0 0
        %559 = vmatprep.subr.bf16.mxu0 0
        %560 = vmatpush1.bf16.xpose.msra.mxu0 0
        %561 = vmatprep.subr.bf16.mxu0 0
        %562 = vmatpush1.bf16.xpose.msra.mxu0 0
        %563 = vmatprep.subr.bf16.mxu0 0
        %564 = vmatpush1.bf16.xpose.msra.mxu0 0
        %565 = vmatprep.subr.bf16.mxu0 0
        %566 = vmatpush1.bf16.xpose.msra.mxu0 0
        %567 = vmatprep.subr.bf16.mxu0 0
        %568 = vmatpush1.bf16.xpose.msra.mxu0 0
        %569 = vmatprep.subr.bf16.mxu0 0
        %570 = vmatpush1.bf16.xpose.msra.mxu0 0
        %571 = vmatprep.subr.bf16.mxu0 0
        %572 = vmatpush1.bf16.xpose.msra.mxu0 %v555
        %573 = vmatprep.subr.bf16.mxu0 0
        %574 = vmatpush2.bf16.xpose.msra.mxu0 0
        %575 = vmatprep.subr.bf16.mxu0 0
        %576 = vmatpush2.bf16.xpose.msra.mxu0 0
        %577 = vmatprep.subr.bf16.mxu0 0
        %578 = vmatpush2.bf16.xpose.msra.mxu0 0
        %579 = vmatprep.subr.bf16.mxu0 0
        %580 = vmatpush2.bf16.xpose.msra.mxu0 0
        %581 = vmatprep.subr.bf16.mxu0 0
        %582 = vmatpush2.bf16.xpose.msra.mxu0 0
        %583 = vmatprep.subr.bf16.mxu0 0
        %584 = vmatpush2.bf16.xpose.msra.mxu0 0
        %585 = vmatprep.subr.bf16.mxu0 0
        %586 = vmatpush2.bf16.xpose.msra.mxu0 0
        %587 = vmatprep.subr.bf16.mxu0 0
        %588 = vmatpush2.bf16.xpose.msra.mxu0 0
        %589 = vmatprep.mubr.bf16.mxu0 0
        %590 = vmatmul.mubr.bf16.gmra.mxu0 %v552
        %v591 = vpop.f32.mrf.mxu0
        %v592 = vadd.f32 0.0, %v591
        %v593 = vpop.f32.mrf.mxu0
        %v594 = vpop.f32.mrf.mxu0
        %v595 = vpop.f32.mrf.mxu0
        %596 = vdwg.mxu0
        %v597 = vmul.f32 %v592, 0.35355338
        %v598 = vsel %vm543, %v597, -1e+30
        %v599 = vsel %vm550, %v598, -inf
        %600 = vmax.xlane.f32.xlu0 %v599
        %v601 = vpop.xlane.xlu0 %600
        %v602 = vsub.f32 %v598, %v601
        %v603 = vmul.f32 %v602, 1.442695
        %v604 = vpow.pop %v603
        %v605 = vsel %vm550, %v604, 0.0
        %606 = vadd.xlane.f32.xlu0 %v605
        %v607 = vpop.xlane.xlu0 %606
        %v608 = vrcp.pop %v607
        %v609 = vmul.f32 %v604, %v608
        %v610 = vpack.c.bf16 %v609, %v609
        %611 = vrot.lane.b32.xlu0 %v547, 64
        %v612 = vpop.permute.xlu0 %611
        %v614 = vsel %vm550, %v610, 0
        %vm616 = vcmask 1043456
        %v618 = vsel %vm616, %v612, 0
        %620 = vmatprep.subr.bf16.mxu0 0
        %621 = vmatpush1.bf16.msra.mxu0 0
        %622 = vmatprep.subr.bf16.mxu0 0
        %623 = vmatpush1.bf16.msra.mxu0 0
        %624 = vmatprep.subr.bf16.mxu0 0
        %625 = vmatpush1.bf16.msra.mxu0 0
        %626 = vmatprep.subr.bf16.mxu0 0
        %627 = vmatpush1.bf16.msra.mxu0 0
        %628 = vmatprep.subr.bf16.mxu0 0
        %629 = vmatpush1.bf16.msra.mxu0 0
        %630 = vmatprep.subr.bf16.mxu0 0
        %631 = vmatpush1.bf16.msra.mxu0 0
        %632 = vmatprep.subr.bf16.mxu0 0
        %633 = vmatpush1.bf16.msra.mxu0 0
        %634 = vmatprep.subr.bf16.mxu0 0
        %635 = vmatpush1.bf16.msra.mxu0 %v618
        %636 = vmatprep.subr.bf16.mxu0 0
        %637 = vmatpush2.bf16.msra.mxu0 0
        %638 = vmatprep.subr.bf16.mxu0 0
        %639 = vmatpush2.bf16.msra.mxu0 0
        %640 = vmatprep.subr.bf16.mxu0 0
        %641 = vmatpush2.bf16.msra.mxu0 0
        %642 = vmatprep.subr.bf16.mxu0 0
        %643 = vmatpush2.bf16.msra.mxu0 0
        %644 = vmatprep.subr.bf16.mxu0 0
        %645 = vmatpush2.bf16.msra.mxu0 0
        %646 = vmatprep.subr.bf16.mxu0 0
        %647 = vmatpush2.bf16.msra.mxu0 0
        %648 = vmatprep.subr.bf16.mxu0 0
        %649 = vmatpush2.bf16.msra.mxu0 0
        %650 = vmatprep.subr.bf16.mxu0 0
        %651 = vmatpush2.bf16.msra.mxu0 0
        %652 = vmatprep.mubr.bf16.mxu0 0
        %653 = vmatmul.mubr.bf16.gmra.mxu0 %v614
        %v654 = vpop.f32.mrf.mxu0
        %v655 = vadd.f32 0.0, %v654
        %v656 = vpop.f32.mrf.mxu0
        %v657 = vpop.f32.mrf.mxu0
        %v658 = vpop.f32.mrf.mxu0
        %659 = vdwg.mxu0
        %v660 = vpack.c.bf16 %v655, %v655
        %v661 = vld [vmem:[%s5] sm:$0xf]
        %662 = vrot.lane.b32.xlu0 %v547, 120
        %v663 = vpop.permute.xlu0 %662
        %664 = vrot.lane.b32.xlu0 %v547, 88
        %v665 = vpop.permute.xlu0 %664
        %v667 = vsel %vm550, %v663, 0
        %v670 = vsel %vm550, %v665, 0
        %672 = vmatprep.subr.bf16.mxu0 0
        %673 = vmatpush1.bf16.xpose.msra.mxu0 0
        %674 = vmatprep.subr.bf16.mxu0 0
        %675 = vmatpush1.bf16.xpose.msra.mxu0 0
        %676 = vmatprep.subr.bf16.mxu0 0
        %677 = vmatpush1.bf16.xpose.msra.mxu0 0
        %678 = vmatprep.subr.bf16.mxu0 0
        %679 = vmatpush1.bf16.xpose.msra.mxu0 0
        %680 = vmatprep.subr.bf16.mxu0 0
        %681 = vmatpush1.bf16.xpose.msra.mxu0 0
        %682 = vmatprep.subr.bf16.mxu0 0
        %683 = vmatpush1.bf16.xpose.msra.mxu0 0
        %684 = vmatprep.subr.bf16.mxu0 0
        %685 = vmatpush1.bf16.xpose.msra.mxu0 0
        %686 = vmatprep.subr.bf16.mxu0 0
        %687 = vmatpush1.bf16.xpose.msra.mxu0 %v670
        %688 = vmatprep.subr.bf16.mxu0 0
        %689 = vmatpush2.bf16.xpose.msra.mxu0 0
        %690 = vmatprep.subr.bf16.mxu0 0
        %691 = vmatpush2.bf16.xpose.msra.mxu0 0
        %692 = vmatprep.subr.bf16.mxu0 0
        %693 = vmatpush2.bf16.xpose.msra.mxu0 0
        %694 = vmatprep.subr.bf16.mxu0 0
        %695 = vmatpush2.bf16.xpose.msra.mxu0 0
        %696 = vmatprep.subr.bf16.mxu0 0
        %697 = vmatpush2.bf16.xpose.msra.mxu0 0
        %698 = vmatprep.subr.bf16.mxu0 0
        %699 = vmatpush2.bf16.xpose.msra.mxu0 0
        %700 = vmatprep.subr.bf16.mxu0 0
        %701 = vmatpush2.bf16.xpose.msra.mxu0 0
        %702 = vmatprep.subr.bf16.mxu0 0
        %703 = vmatpush2.bf16.xpose.msra.mxu0 0
        %704 = vmatprep.mubr.bf16.mxu0 0
        %705 = vmatmul.mubr.bf16.gmra.mxu0 %v667
        %v706 = vpop.f32.mrf.mxu0
        %v707 = vadd.f32 0.0, %v706
        %v708 = vpop.f32.mrf.mxu0
        %v709 = vpop.f32.mrf.mxu0
        %v710 = vpop.f32.mrf.mxu0
        %711 = vdwg.mxu0
        %v712 = vmul.f32 %v707, 0.35355338
        %v713 = vsel %vm543, %v712, -1e+30
        %v714 = vsel %vm550, %v713, -inf
        %715 = vmax.xlane.f32.xlu0 %v714
        %v716 = vpop.xlane.xlu0 %715
        %v717 = vsub.f32 %v713, %v716
        %v718 = vmul.f32 %v717, 1.442695
        %v719 = vpow.pop %v718
        %v720 = vsel %vm550, %v719, 0.0
        %721 = vadd.xlane.f32.xlu0 %v720
        %v722 = vpop.xlane.xlu0 %721
        %v723 = vrcp.pop %v722
        %v724 = vmul.f32 %v719, %v723
        %v725 = vpack.c.bf16 %v724, %v724
        %726 = vrot.lane.b32.xlu0 %v547, 56
        %v727 = vpop.permute.xlu0 %726
        %v729 = vsel %vm550, %v725, 0
        %v732 = vsel %vm616, %v727, 0
        %734 = vmatprep.subr.bf16.mxu0 0
        %735 = vmatpush1.bf16.msra.mxu0 0
        %736 = vmatprep.subr.bf16.mxu0 0
        %737 = vmatpush1.bf16.msra.mxu0 0
        %738 = vmatprep.subr.bf16.mxu0 0
        %739 = vmatpush1.bf16.msra.mxu0 0
        %740 = vmatprep.subr.bf16.mxu0 0
        %741 = vmatpush1.bf16.msra.mxu0 0
        %742 = vmatprep.subr.bf16.mxu0 0
        %743 = vmatpush1.bf16.msra.mxu0 0
        %744 = vmatprep.subr.bf16.mxu0 0
        %745 = vmatpush1.bf16.msra.mxu0 0
        %746 = vmatprep.subr.bf16.mxu0 0
        %747 = vmatpush1.bf16.msra.mxu0 0
        %748 = vmatprep.subr.bf16.mxu0 0
        %749 = vmatpush1.bf16.msra.mxu0 %v732
        %750 = vmatprep.subr.bf16.mxu0 0
        %751 = vmatpush2.bf16.msra.mxu0 0
        %752 = vmatprep.subr.bf16.mxu0 0
        %753 = vmatpush2.bf16.msra.mxu0 0
        %754 = vmatprep.subr.bf16.mxu0 0
        %755 = vmatpush2.bf16.msra.mxu0 0
        %756 = vmatprep.subr.bf16.mxu0 0
        %757 = vmatpush2.bf16.msra.mxu0 0
        %758 = vmatprep.subr.bf16.mxu0 0
        %759 = vmatpush2.bf16.msra.mxu0 0
        %760 = vmatprep.subr.bf16.mxu0 0
        %761 = vmatpush2.bf16.msra.mxu0 0
        %762 = vmatprep.subr.bf16.mxu0 0
        %763 = vmatpush2.bf16.msra.mxu0 0
        %764 = vmatprep.subr.bf16.mxu0 0
        %765 = vmatpush2.bf16.msra.mxu0 0
        %766 = vmatprep.mubr.bf16.mxu0 0
        %767 = vmatmul.mubr.bf16.gmra.mxu0 %v729
        %v768 = vpop.f32.mrf.mxu0
        %v769 = vadd.f32 0.0, %v768
        %v770 = vpop.f32.mrf.mxu0
        %v771 = vpop.f32.mrf.mxu0
        %v772 = vpop.f32.mrf.mxu0
        %773 = vdwg.mxu0
        %v774 = vpack.c.bf16 %v769, %v769
        %v775 = vld [vmem:[%s5 + $0x4] sm:$0xf]
        %v777 = vsel %vm550, %v774, 0
        %v780 = vsel %vm616, %v775, 0
        %782 = vmatprep.subr.bf16.mxu0 0
        %783 = vmatpush1.bf16.msra.mxu0 0
        %784 = vmatprep.subr.bf16.mxu0 0
        %785 = vmatpush1.bf16.msra.mxu0 0
        %786 = vmatprep.subr.bf16.mxu0 0
        %787 = vmatpush1.bf16.msra.mxu0 0
        %788 = vmatprep.subr.bf16.mxu0 0
        %789 = vmatpush1.bf16.msra.mxu0 0
        %790 = vmatprep.subr.bf16.mxu0 0
        %791 = vmatpush1.bf16.msra.mxu0 0
        %792 = vmatprep.subr.bf16.mxu0 0
        %793 = vmatpush1.bf16.msra.mxu0 0
        %794 = vmatprep.subr.bf16.mxu0 0
        %795 = vmatpush1.bf16.msra.mxu0 0
        %796 = vmatprep.subr.bf16.mxu0 0
        %797 = vmatpush1.bf16.msra.mxu0 %v780
        %798 = vmatprep.subr.bf16.mxu0 0
        %799 = vmatpush2.bf16.msra.mxu0 0
        %800 = vmatprep.subr.bf16.mxu0 0
        %801 = vmatpush2.bf16.msra.mxu0 0
        %802 = vmatprep.subr.bf16.mxu0 0
        %803 = vmatpush2.bf16.msra.mxu0 0
        %804 = vmatprep.subr.bf16.mxu0 0
        %805 = vmatpush2.bf16.msra.mxu0 0
        %806 = vmatprep.subr.bf16.mxu0 0
        %807 = vmatpush2.bf16.msra.mxu0 0
        %808 = vmatprep.subr.bf16.mxu0 0
        %809 = vmatpush2.bf16.msra.mxu0 0
        %810 = vmatprep.subr.bf16.mxu0 0
        %811 = vmatpush2.bf16.msra.mxu0 0
        %812 = vmatprep.subr.bf16.mxu0 0
        %813 = vmatpush2.bf16.msra.mxu0 0
        %814 = vmatprep.mubr.bf16.mxu0 0
        %815 = vmatmul.mubr.bf16.gmra.mxu0 %v777
        %v816 = vpop.f32.mrf.mxu0
        %v817 = vadd.f32 0.0, %v816
        %v818 = vpop.f32.mrf.mxu0
        %v819 = vpop.f32.mrf.mxu0
        %v820 = vpop.f32.mrf.mxu0
        %821 = vdwg.mxu0
        %v823 = vsel %vm550, %v660, 0
        %v826 = vsel %vm616, %v661, 0
        %828 = vmatprep.subr.bf16.mxu0 0
        %829 = vmatpush1.bf16.msra.mxu0 0
        %830 = vmatprep.subr.bf16.mxu0 0
        %831 = vmatpush1.bf16.msra.mxu0 0
        %832 = vmatprep.subr.bf16.mxu0 0
        %833 = vmatpush1.bf16.msra.mxu0 0
        %834 = vmatprep.subr.bf16.mxu0 0
        %835 = vmatpush1.bf16.msra.mxu0 0
        %836 = vmatprep.subr.bf16.mxu0 0
        %837 = vmatpush1.bf16.msra.mxu0 0
        %838 = vmatprep.subr.bf16.mxu0 0
        %839 = vmatpush1.bf16.msra.mxu0 0
        %840 = vmatprep.subr.bf16.mxu0 0
        %841 = vmatpush1.bf16.msra.mxu0 0
        %842 = vmatprep.subr.bf16.mxu0 0
        %843 = vmatpush1.bf16.msra.mxu0 %v826
        %844 = vmatprep.subr.bf16.mxu0 0
        %845 = vmatpush2.bf16.msra.mxu0 0
        %846 = vmatprep.subr.bf16.mxu0 0
        %847 = vmatpush2.bf16.msra.mxu0 0
        %848 = vmatprep.subr.bf16.mxu0 0
        %849 = vmatpush2.bf16.msra.mxu0 0
        %850 = vmatprep.subr.bf16.mxu0 0
        %851 = vmatpush2.bf16.msra.mxu0 0
        %852 = vmatprep.subr.bf16.mxu0 0
        %853 = vmatpush2.bf16.msra.mxu0 0
        %854 = vmatprep.subr.bf16.mxu0 0
        %855 = vmatpush2.bf16.msra.mxu0 0
        %856 = vmatprep.subr.bf16.mxu0 0
        %857 = vmatpush2.bf16.msra.mxu0 0
        %858 = vmatprep.subr.bf16.mxu0 0
        %859 = vmatpush2.bf16.msra.mxu0 0
        %860 = vmatprep.mubr.bf16.mxu0 0
        %861 = vmatmul.mubr.bf16.gmra.mxu0 %v823
        %v862 = vpop.f32.mrf.mxu0
        %v863 = vadd.f32 %v817, %v862
        %v864 = vpop.f32.mrf.mxu0
        %v865 = vpop.f32.mrf.mxu0
        %v866 = vpop.f32.mrf.mxu0
        %867 = vdwg.mxu0
        %868 = vrot.lane.b32.xlu0 %v547, 112
        %v869 = vpop.permute.xlu0 %868
        %870 = vrot.lane.b32.xlu0 %v547, 80
        %v871 = vpop.permute.xlu0 %870
        %v873 = vsel %vm550, %v869, 0
        %v876 = vsel %vm550, %v871, 0
        %878 = vmatprep.subr.bf16.mxu0 0
        %879 = vmatpush1.bf16.xpose.msra.mxu0 0
        %880 = vmatprep.subr.bf16.mxu0 0
        %881 = vmatpush1.bf16.xpose.msra.mxu0 0
        %882 = vmatprep.subr.bf16.mxu0 0
        %883 = vmatpush1.bf16.xpose.msra.mxu0 0
        %884 = vmatprep.subr.bf16.mxu0 0
        %885 = vmatpush1.bf16.xpose.msra.mxu0 0
        %886 = vmatprep.subr.bf16.mxu0 0
        %887 = vmatpush1.bf16.xpose.msra.mxu0 0
        %888 = vmatprep.subr.bf16.mxu0 0
        %889 = vmatpush1.bf16.xpose.msra.mxu0 0
        %890 = vmatprep.subr.bf16.mxu0 0
        %891 = vmatpush1.bf16.xpose.msra.mxu0 0
        %892 = vmatprep.subr.bf16.mxu0 0
        %893 = vmatpush1.bf16.xpose.msra.mxu0 %v876
        %894 = vmatprep.subr.bf16.mxu0 0
        %895 = vmatpush2.bf16.xpose.msra.mxu0 0
        %896 = vmatprep.subr.bf16.mxu0 0
        %897 = vmatpush2.bf16.xpose.msra.mxu0 0
        %898 = vmatprep.subr.bf16.mxu0 0
        %899 = vmatpush2.bf16.xpose.msra.mxu0 0
        %900 = vmatprep.subr.bf16.mxu0 0
        %901 = vmatpush2.bf16.xpose.msra.mxu0 0
        %902 = vmatprep.subr.bf16.mxu0 0
        %903 = vmatpush2.bf16.xpose.msra.mxu0 0
        %904 = vmatprep.subr.bf16.mxu0 0
        %905 = vmatpush2.bf16.xpose.msra.mxu0 0
        %906 = vmatprep.subr.bf16.mxu0 0
        %907 = vmatpush2.bf16.xpose.msra.mxu0 0
        %908 = vmatprep.subr.bf16.mxu0 0
        %909 = vmatpush2.bf16.xpose.msra.mxu0 0
        %910 = vmatprep.mubr.bf16.mxu0 0
        %911 = vmatmul.mubr.bf16.gmra.mxu0 %v873
        %v912 = vpop.f32.mrf.mxu0
        %v913 = vadd.f32 0.0, %v912
        %v914 = vpop.f32.mrf.mxu0
        %v915 = vpop.f32.mrf.mxu0
        %v916 = vpop.f32.mrf.mxu0
        %917 = vdwg.mxu0
        %v918 = vmul.f32 %v913, 0.35355338
        %v919 = vsel %vm543, %v918, -1e+30
        %v920 = vsel %vm550, %v919, -inf
        %921 = vmax.xlane.f32.xlu0 %v920
        %v922 = vpop.xlane.xlu0 %921
        %v923 = vsub.f32 %v919, %v922
        %v924 = vmul.f32 %v923, 1.442695
        %v925 = vpow.pop %v924
        %v926 = vsel %vm550, %v925, 0.0
        %927 = vadd.xlane.f32.xlu0 %v926
        %v928 = vpop.xlane.xlu0 %927
        %v929 = vrcp.pop %v928
        %v930 = vmul.f32 %v925, %v929
        %v931 = vpack.c.bf16 %v930, %v930
        %932 = vrot.lane.b32.xlu0 %v547, 48
        %v933 = vpop.permute.xlu0 %932
        %v935 = vsel %vm550, %v931, 0
        %v938 = vsel %vm616, %v933, 0
        %940 = vmatprep.subr.bf16.mxu0 0
        %941 = vmatpush1.bf16.msra.mxu0 0
        %942 = vmatprep.subr.bf16.mxu0 0
        %943 = vmatpush1.bf16.msra.mxu0 0
        %944 = vmatprep.subr.bf16.mxu0 0
        %945 = vmatpush1.bf16.msra.mxu0 0
        %946 = vmatprep.subr.bf16.mxu0 0
        %947 = vmatpush1.bf16.msra.mxu0 0
        %948 = vmatprep.subr.bf16.mxu0 0
        %949 = vmatpush1.bf16.msra.mxu0 0
        %950 = vmatprep.subr.bf16.mxu0 0
        %951 = vmatpush1.bf16.msra.mxu0 0
        %952 = vmatprep.subr.bf16.mxu0 0
        %953 = vmatpush1.bf16.msra.mxu0 0
        %954 = vmatprep.subr.bf16.mxu0 0
        %955 = vmatpush1.bf16.msra.mxu0 %v938
        %956 = vmatprep.subr.bf16.mxu0 0
        %957 = vmatpush2.bf16.msra.mxu0 0
        %958 = vmatprep.subr.bf16.mxu0 0
        %959 = vmatpush2.bf16.msra.mxu0 0
        %960 = vmatprep.subr.bf16.mxu0 0
        %961 = vmatpush2.bf16.msra.mxu0 0
        %962 = vmatprep.subr.bf16.mxu0 0
        %963 = vmatpush2.bf16.msra.mxu0 0
        %964 = vmatprep.subr.bf16.mxu0 0
        %965 = vmatpush2.bf16.msra.mxu0 0
        %966 = vmatprep.subr.bf16.mxu0 0
        %967 = vmatpush2.bf16.msra.mxu0 0
        %968 = vmatprep.subr.bf16.mxu0 0
        %969 = vmatpush2.bf16.msra.mxu0 0
        %970 = vmatprep.subr.bf16.mxu0 0
        %971 = vmatpush2.bf16.msra.mxu0 0
        %972 = vmatprep.mubr.bf16.mxu0 0
        %973 = vmatmul.mubr.bf16.gmra.mxu0 %v935
        %v974 = vpop.f32.mrf.mxu0
        %v975 = vadd.f32 0.0, %v974
        %v976 = vpop.f32.mrf.mxu0
        %v977 = vpop.f32.mrf.mxu0
        %v978 = vpop.f32.mrf.mxu0
        %979 = vdwg.mxu0
        %v980 = vpack.c.bf16 %v975, %v975
        %v981 = vld [vmem:[%s5 + $0x8] sm:$0xf]
        %v983 = vsel %vm550, %v980, 0
        %v986 = vsel %vm616, %v981, 0
        %988 = vmatprep.subr.bf16.mxu0 0
        %989 = vmatpush1.bf16.msra.mxu0 0
        %990 = vmatprep.subr.bf16.mxu0 0
        %991 = vmatpush1.bf16.msra.mxu0 0
        %992 = vmatprep.subr.bf16.mxu0 0
        %993 = vmatpush1.bf16.msra.mxu0 0
        %994 = vmatprep.subr.bf16.mxu0 0
        %995 = vmatpush1.bf16.msra.mxu0 0
        %996 = vmatprep.subr.bf16.mxu0 0
        %997 = vmatpush1.bf16.msra.mxu0 0
        %998 = vmatprep.subr.bf16.mxu0 0
        %999 = vmatpush1.bf16.msra.mxu0 0
        %1000 = vmatprep.subr.bf16.mxu0 0
        %1001 = vmatpush1.bf16.msra.mxu0 0
        %1002 = vmatprep.subr.bf16.mxu0 0
        %1003 = vmatpush1.bf16.msra.mxu0 %v986
        %1004 = vmatprep.subr.bf16.mxu0 0
        %1005 = vmatpush2.bf16.msra.mxu0 0
        %1006 = vmatprep.subr.bf16.mxu0 0
        %1007 = vmatpush2.bf16.msra.mxu0 0
        %1008 = vmatprep.subr.bf16.mxu0 0
        %1009 = vmatpush2.bf16.msra.mxu0 0
        %1010 = vmatprep.subr.bf16.mxu0 0
        %1011 = vmatpush2.bf16.msra.mxu0 0
        %1012 = vmatprep.subr.bf16.mxu0 0
        %1013 = vmatpush2.bf16.msra.mxu0 0
        %1014 = vmatprep.subr.bf16.mxu0 0
        %1015 = vmatpush2.bf16.msra.mxu0 0
        %1016 = vmatprep.subr.bf16.mxu0 0
        %1017 = vmatpush2.bf16.msra.mxu0 0
        %1018 = vmatprep.subr.bf16.mxu0 0
        %1019 = vmatpush2.bf16.msra.mxu0 0
        %1020 = vmatprep.mubr.bf16.mxu0 0
        %1021 = vmatmul.mubr.bf16.gmra.mxu0 %v983
        %v1022 = vpop.f32.mrf.mxu0
        %v1023 = vadd.f32 0.0, %v1022
        %v1024 = vpop.f32.mrf.mxu0
        %v1025 = vpop.f32.mrf.mxu0
        %v1026 = vpop.f32.mrf.mxu0
        %1027 = vdwg.mxu0
        %v1028 = vadd.f32 %v863, %v1023
        %1029 = vrot.lane.b32.xlu0 %v547, 104
        %v1030 = vpop.permute.xlu0 %1029
        %1031 = vrot.lane.b32.xlu0 %v547, 72
        %v1032 = vpop.permute.xlu0 %1031
        %v1034 = vsel %vm550, %v1030, 0
        %v1037 = vsel %vm550, %v1032, 0
        %1039 = vmatprep.subr.bf16.mxu0 0
        %1040 = vmatpush1.bf16.xpose.msra.mxu0 0
        %1041 = vmatprep.subr.bf16.mxu0 0
        %1042 = vmatpush1.bf16.xpose.msra.mxu0 0
        %1043 = vmatprep.subr.bf16.mxu0 0
        %1044 = vmatpush1.bf16.xpose.msra.mxu0 0
        %1045 = vmatprep.subr.bf16.mxu0 0
        %1046 = vmatpush1.bf16.xpose.msra.mxu0 0
        %1047 = vmatprep.subr.bf16.mxu0 0
        %1048 = vmatpush1.bf16.xpose.msra.mxu0 0
        %1049 = vmatprep.subr.bf16.mxu0 0
        %1050 = vmatpush1.bf16.xpose.msra.mxu0 0
        %1051 = vmatprep.subr.bf16.mxu0 0
        %1052 = vmatpush1.bf16.xpose.msra.mxu0 0
        %1053 = vmatprep.subr.bf16.mxu0 0
        %1054 = vmatpush1.bf16.xpose.msra.mxu0 %v1037
        %1055 = vmatprep.subr.bf16.mxu0 0
        %1056 = vmatpush2.bf16.xpose.msra.mxu0 0
        %1057 = vmatprep.subr.bf16.mxu0 0
        %1058 = vmatpush2.bf16.xpose.msra.mxu0 0
        %1059 = vmatprep.subr.bf16.mxu0 0
        %1060 = vmatpush2.bf16.xpose.msra.mxu0 0
        %1061 = vmatprep.subr.bf16.mxu0 0
        %1062 = vmatpush2.bf16.xpose.msra.mxu0 0
        %1063 = vmatprep.subr.bf16.mxu0 0
        %1064 = vmatpush2.bf16.xpose.msra.mxu0 0
        %1065 = vmatprep.subr.bf16.mxu0 0
        %1066 = vmatpush2.bf16.xpose.msra.mxu0 0
        %1067 = vmatprep.subr.bf16.mxu0 0
        %1068 = vmatpush2.bf16.xpose.msra.mxu0 0
        %1069 = vmatprep.subr.bf16.mxu0 0
        %1070 = vmatpush2.bf16.xpose.msra.mxu0 0
        %1071 = vmatprep.mubr.bf16.mxu0 0
        %1072 = vmatmul.mubr.bf16.gmra.mxu0 %v1034
        %v1073 = vpop.f32.mrf.mxu0
        %v1074 = vadd.f32 0.0, %v1073
        %v1075 = vpop.f32.mrf.mxu0
        %v1076 = vpop.f32.mrf.mxu0
        %v1077 = vpop.f32.mrf.mxu0
        %1078 = vdwg.mxu0
        %v1079 = vmul.f32 %v1074, 0.35355338
        %v1080 = vsel %vm543, %v1079, -1e+30
        %v1081 = vsel %vm550, %v1080, -inf
        %1082 = vmax.xlane.f32.xlu0 %v1081
        %v1083 = vpop.xlane.xlu0 %1082
        %v1084 = vsub.f32 %v1080, %v1083
        %v1085 = vmul.f32 %v1084, 1.442695
        %v1086 = vpow.pop %v1085
        %v1087 = vsel %vm550, %v1086, 0.0
        %1088 = vadd.xlane.f32.xlu0 %v1087
        %v1089 = vpop.xlane.xlu0 %1088
        %v1090 = vrcp.pop %v1089
        %v1091 = vmul.f32 %v1086, %v1090
        %v1092 = vpack.c.bf16 %v1091, %v1091
        %1093 = vrot.lane.b32.xlu0 %v547, 40
        %v1094 = vpop.permute.xlu0 %1093
        %v1096 = vsel %vm550, %v1092, 0
        %v1099 = vsel %vm616, %v1094, 0
        %1101 = vmatprep.subr.bf16.mxu0 0
        %1102 = vmatpush1.bf16.msra.mxu0 0
        %1103 = vmatprep.subr.bf16.mxu0 0
        %1104 = vmatpush1.bf16.msra.mxu0 0
        %1105 = vmatprep.subr.bf16.mxu0 0
        %1106 = vmatpush1.bf16.msra.mxu0 0
        %1107 = vmatprep.subr.bf16.mxu0 0
        %1108 = vmatpush1.bf16.msra.mxu0 0
        %1109 = vmatprep.subr.bf16.mxu0 0
        %1110 = vmatpush1.bf16.msra.mxu0 0
        %1111 = vmatprep.subr.bf16.mxu0 0
        %1112 = vmatpush1.bf16.msra.mxu0 0
        %1113 = vmatprep.subr.bf16.mxu0 0
        %1114 = vmatpush1.bf16.msra.mxu0 0
        %1115 = vmatprep.subr.bf16.mxu0 0
        %1116 = vmatpush1.bf16.msra.mxu0 %v1099
        %1117 = vmatprep.subr.bf16.mxu0 0
        %1118 = vmatpush2.bf16.msra.mxu0 0
        %1119 = vmatprep.subr.bf16.mxu0 0
        %1120 = vmatpush2.bf16.msra.mxu0 0
        %1121 = vmatprep.subr.bf16.mxu0 0
        %1122 = vmatpush2.bf16.msra.mxu0 0
        %1123 = vmatprep.subr.bf16.mxu0 0
        %1124 = vmatpush2.bf16.msra.mxu0 0
        %1125 = vmatprep.subr.bf16.mxu0 0
        %1126 = vmatpush2.bf16.msra.mxu0 0
        %1127 = vmatprep.subr.bf16.mxu0 0
        %1128 = vmatpush2.bf16.msra.mxu0 0
        %1129 = vmatprep.subr.bf16.mxu0 0
        %1130 = vmatpush2.bf16.msra.mxu0 0
        %1131 = vmatprep.subr.bf16.mxu0 0
        %1132 = vmatpush2.bf16.msra.mxu0 0
        %1133 = vmatprep.mubr.bf16.mxu0 0
        %1134 = vmatmul.mubr.bf16.gmra.mxu0 %v1096
        %v1135 = vpop.f32.mrf.mxu0
        %v1136 = vadd.f32 0.0, %v1135
        %v1137 = vpop.f32.mrf.mxu0
        %v1138 = vpop.f32.mrf.mxu0
        %v1139 = vpop.f32.mrf.mxu0
        %1140 = vdwg.mxu0
        %v1141 = vpack.c.bf16 %v1136, %v1136
        %v1142 = vld [vmem:[%s5 + $0xc] sm:$0xf]
        %v1144 = vsel %vm550, %v1141, 0
        %v1147 = vsel %vm616, %v1142, 0
        %1149 = vmatprep.subr.bf16.mxu0 0
        %1150 = vmatpush1.bf16.msra.mxu0 0
        %1151 = vmatprep.subr.bf16.mxu0 0
        %1152 = vmatpush1.bf16.msra.mxu0 0
        %1153 = vmatprep.subr.bf16.mxu0 0
        %1154 = vmatpush1.bf16.msra.mxu0 0
        %1155 = vmatprep.subr.bf16.mxu0 0
        %1156 = vmatpush1.bf16.msra.mxu0 0
        %1157 = vmatprep.subr.bf16.mxu0 0
        %1158 = vmatpush1.bf16.msra.mxu0 0
        %1159 = vmatprep.subr.bf16.mxu0 0
        %1160 = vmatpush1.bf16.msra.mxu0 0
        %1161 = vmatprep.subr.bf16.mxu0 0
        %1162 = vmatpush1.bf16.msra.mxu0 0
        %1163 = vmatprep.subr.bf16.mxu0 0
        %1164 = vmatpush1.bf16.msra.mxu0 %v1147
        %1165 = vmatprep.subr.bf16.mxu0 0
        %1166 = vmatpush2.bf16.msra.mxu0 0
        %1167 = vmatprep.subr.bf16.mxu0 0
        %1168 = vmatpush2.bf16.msra.mxu0 0
        %1169 = vmatprep.subr.bf16.mxu0 0
        %1170 = vmatpush2.bf16.msra.mxu0 0
        %1171 = vmatprep.subr.bf16.mxu0 0
        %1172 = vmatpush2.bf16.msra.mxu0 0
        %1173 = vmatprep.subr.bf16.mxu0 0
        %1174 = vmatpush2.bf16.msra.mxu0 0
        %1175 = vmatprep.subr.bf16.mxu0 0
        %1176 = vmatpush2.bf16.msra.mxu0 0
        %1177 = vmatprep.subr.bf16.mxu0 0
        %1178 = vmatpush2.bf16.msra.mxu0 0
        %1179 = vmatprep.subr.bf16.mxu0 0
        %1180 = vmatpush2.bf16.msra.mxu0 0
        %1181 = vmatprep.mubr.bf16.mxu0 0
        %1182 = vmatmul.mubr.bf16.gmra.mxu0 %v1144
        %v1183 = vpop.f32.mrf.mxu0
        %v1184 = vadd.f32 0.0, %v1183
        %v1185 = vpop.f32.mrf.mxu0
        %v1186 = vpop.f32.mrf.mxu0
        %v1187 = vpop.f32.mrf.mxu0
        %1188 = vdwg.mxu0
        %v1189 = vadd.f32 %v1028, %v1184
        %v1190 = vld [vmem:[%s435] sm:$0xff]
        %v1191 = vadd.f32 %v1190, %v1189
        %v1192 = vld [vmem:[%s6] sm:$0x1]
        %v1194 = vlaneseq
        %v1195 = vshrl.u32 %v1194, 7
        %v1196 = vsub.s32 0, %v1195
        %v1197 = vrot.slane %v1192, %v1196
        %v1199 = vadd.f32 %v1191, %v1197
        %v1200 = vld [vmem:[%s7] sm:$0x1]
        %v1201 = vld [vmem:[%s8] sm:$0x1]
        %v1202 = vsel %vm440, %v1199, 0.0
        %1203 = vadd.xlane.f32.xlu0 %v1202
        %v1204 = vpop.xlane.xlu0 %1203
        %v1205 = vmul.f32 %v1204, %v444
        %v1206 = vsub.f32 %v1199, %v1205
        %v1207 = vmul.f32 %v1206, %v1206
        %v1208 = vsel %vm440, %v1207, 0.0
        %1209 = vadd.xlane.f32.xlu0 %v1208
        %v1210 = vpop.xlane.xlu0 %1209
        %v1211 = vmul.f32 %v1210, %v444
        %v1212 = vadd.f32 %v1211, 1e-05
        %v1213 = vrsqrt.pop %v1212
        %v1214 = vmul.f32 %v1206, %v1213
        %v1216 = vlaneseq
        %v1217 = vshrl.u32 %v1216, 7
        %v1218 = vsub.s32 0, %v1217
        %v1219 = vrot.slane %v1200, %v1218
        %v1221 = vmul.f32 %v1214, %v1219
        %v1223 = vlaneseq
        %v1224 = vshrl.u32 %v1223, 7
        %v1225 = vsub.s32 0, %v1224
        %v1226 = vrot.slane %v1201, %v1225
        %v1228 = vadd.f32 %v1221, %v1226
        %v1229 = vpack.c.bf16 %v1228, %v1228
        %v1230 = vld [vmem:[%s9] sm:$0xf]
        %v1231 = vld [vmem:[%s9 + $0x4] sm:$0xf]
        %v1232 = vld [vmem:[%s9 + $0x8] sm:$0xf]
        %v1233 = vld [vmem:[%s9 + $0xc] sm:$0xf]
        %v1234 = vld [vmem:[%s10] sm:$0x1]
        %v1236 = vlaneseq
        %v1237 = vshrl.u32 %v1236, 7
        %v1238 = vsub.s32 0, %v1237
        %v1239 = vrot.slane %v1234, %v1238
        %v1245 = vunpack.c.l.b16 %v1230
        %v1246 = vunpack.c.l.b16 %v1231
        %v1247 = vunpack.c.l.b16 %v1232
        %v1248 = vunpack.c.l.b16 %v1233
        %v1249 = vpack.c.b16 %v1246, %v1245
        %v1250 = vpack.c.b16 %v1248, %v1247
        %v1254 = vsel %vm440, %v1229, 0
        %1256 = vmatprep.subr.bf16.mxu0 0
        %1257 = vmatpush1.bf16.msra.mxu0 0
        %1258 = vmatprep.subr.bf16.mxu0 0
        %1259 = vmatpush1.bf16.msra.mxu0 0
        %1260 = vmatprep.subr.bf16.mxu0 0
        %1261 = vmatpush1.bf16.msra.mxu0 0
        %1262 = vmatprep.subr.bf16.mxu0 0
        %1263 = vmatpush1.bf16.msra.mxu0 0
        %1264 = vmatprep.subr.bf16.mxu0 0
        %1265 = vmatpush1.bf16.msra.mxu0 0
        %1266 = vmatprep.subr.bf16.mxu0 0
        %1267 = vmatpush1.bf16.msra.mxu0 0
        %1268 = vmatprep.subr.bf16.mxu0 0
        %1269 = vmatpush1.bf16.msra.mxu0 %v1250
        %1270 = vmatprep.subr.bf16.mxu0 0
        %1271 = vmatpush1.bf16.msra.mxu0 %v1249
        %1272 = vmatprep.subr.bf16.mxu0 0
        %1273 = vmatpush2.bf16.msra.mxu0 0
        %1274 = vmatprep.subr.bf16.mxu0 0
        %1275 = vmatpush2.bf16.msra.mxu0 0
        %1276 = vmatprep.subr.bf16.mxu0 0
        %1277 = vmatpush2.bf16.msra.mxu0 0
        %1278 = vmatprep.subr.bf16.mxu0 0
        %1279 = vmatpush2.bf16.msra.mxu0 0
        %1280 = vmatprep.subr.bf16.mxu0 0
        %1281 = vmatpush2.bf16.msra.mxu0 0
        %1282 = vmatprep.subr.bf16.mxu0 0
        %1283 = vmatpush2.bf16.msra.mxu0 0
        %1284 = vmatprep.subr.bf16.mxu0 0
        %1285 = vmatpush2.bf16.msra.mxu0 0
        %1286 = vmatprep.subr.bf16.mxu0 0
        %1287 = vmatpush2.bf16.msra.mxu0 0
        %1288 = vmatprep.mubr.bf16.mxu0 0
        %1289 = vmatmul.mubr.bf16.gmra.mxu0 %v1254
        %v1290 = vpop.f32.mrf.mxu0
        %v1291 = vadd.f32 %v1239, %v1290
        %v1292 = vpop.f32.mrf.mxu0
        %v1293 = vpop.f32.mrf.mxu0
        %v1294 = vpop.f32.mrf.mxu0
        %1295 = vdwg.mxu0
        %v1296 = vmul.f32 %v1291, 0.5
        %v1297 = vmul.f32 %v1291, %v1291
        %v1298 = vmul.f32 %v1291, %v1297
        %v1299 = vmul.f32 %v1298, 0.044715
        %v1300 = vadd.f32 %v1291, %v1299
        %v1301 = vmul.f32 %v1300, 0.7978846
        %v1302 = vtanh.pop %v1301
        %v1303 = vadd.f32 %v1302, 1.0
        %v1304 = vmul.f32 %v1296, %v1303
        %v1305 = vpack.c.bf16 %v1304, %v1304
        %v1306 = vld [vmem:[%s11] sm:$0xf]
        %v1307 = vld [vmem:[%s11 + $0x4] sm:$0xf]
        %v1308 = vld [vmem:[%s11 + $0x8] sm:$0xf]
        %v1309 = vld [vmem:[%s11 + $0xc] sm:$0xf]
        %v1310 = vld [vmem:[%s11 + $0x10] sm:$0xf]
        %v1311 = vld [vmem:[%s11 + $0x14] sm:$0xf]
        %v1312 = vld [vmem:[%s11 + $0x18] sm:$0xf]
        %v1313 = vld [vmem:[%s11 + $0x1c] sm:$0xf]
        %v1314 = vld [vmem:[%s11 + $0x20] sm:$0xf]
        %v1315 = vld [vmem:[%s11 + $0x24] sm:$0xf]
        %v1316 = vld [vmem:[%s11 + $0x28] sm:$0xf]
        %v1317 = vld [vmem:[%s11 + $0x2c] sm:$0xf]
        %v1318 = vld [vmem:[%s11 + $0x30] sm:$0xf]
        %v1319 = vld [vmem:[%s11 + $0x34] sm:$0xf]
        %v1320 = vld [vmem:[%s11 + $0x38] sm:$0xf]
        %v1321 = vld [vmem:[%s11 + $0x3c] sm:$0xf]
        %v1322 = vld [vmem:[%s12] sm:$0x1]
        %v1324 = vlaneseq
        %v1325 = vshrl.u32 %v1324, 7
        %v1326 = vsub.s32 0, %v1325
        %v1327 = vrot.slane %v1322, %v1326
        %v1345 = vunpack.c.l.b16 %v1306
        %v1346 = vunpack.c.l.b16 %v1307
        %v1347 = vunpack.c.l.b16 %v1308
        %v1348 = vunpack.c.l.b16 %v1309
        %v1349 = vunpack.c.l.b16 %v1310
        %v1350 = vunpack.c.l.b16 %v1311
        %v1351 = vunpack.c.l.b16 %v1312
        %v1352 = vunpack.c.l.b16 %v1313
        %v1353 = vunpack.c.l.b16 %v1314
        %v1354 = vunpack.c.l.b16 %v1315
        %v1355 = vunpack.c.l.b16 %v1316
        %v1356 = vunpack.c.l.b16 %v1317
        %v1357 = vunpack.c.l.b16 %v1318
        %v1358 = vunpack.c.l.b16 %v1319
        %v1359 = vunpack.c.l.b16 %v1320
        %v1360 = vunpack.c.l.b16 %v1321
        %v1361 = vpack.c.b16 %v1346, %v1345
        %v1362 = vpack.c.b16 %v1348, %v1347
        %v1363 = vpack.c.b16 %v1350, %v1349
        %v1364 = vpack.c.b16 %v1352, %v1351
        %v1365 = vpack.c.b16 %v1354, %v1353
        %v1366 = vpack.c.b16 %v1356, %v1355
        %v1367 = vpack.c.b16 %v1358, %v1357
        %v1368 = vpack.c.b16 %v1360, %v1359
        %1377 = vmatprep.subr.bf16.mxu0 0
        %1378 = vmatpush1.bf16.msra.mxu0 %v1368
        %1379 = vmatprep.subr.bf16.mxu0 0
        %1380 = vmatpush1.bf16.msra.mxu0 %v1367
        %1381 = vmatprep.subr.bf16.mxu0 0
        %1382 = vmatpush1.bf16.msra.mxu0 %v1366
        %1383 = vmatprep.subr.bf16.mxu0 0
        %1384 = vmatpush1.bf16.msra.mxu0 %v1365
        %1385 = vmatprep.subr.bf16.mxu0 0
        %1386 = vmatpush1.bf16.msra.mxu0 %v1364
        %1387 = vmatprep.subr.bf16.mxu0 0
        %1388 = vmatpush1.bf16.msra.mxu0 %v1363
        %1389 = vmatprep.subr.bf16.mxu0 0
        %1390 = vmatpush1.bf16.msra.mxu0 %v1362
        %1391 = vmatprep.subr.bf16.mxu0 0
        %1392 = vmatpush1.bf16.msra.mxu0 %v1361
        %1393 = vmatprep.subr.bf16.mxu0 0
        %1394 = vmatpush2.bf16.msra.mxu0 0
        %1395 = vmatprep.subr.bf16.mxu0 0
        %1396 = vmatpush2.bf16.msra.mxu0 0
        %1397 = vmatprep.subr.bf16.mxu0 0
        %1398 = vmatpush2.bf16.msra.mxu0 0
        %1399 = vmatprep.subr.bf16.mxu0 0
        %1400 = vmatpush2.bf16.msra.mxu0 0
        %1401 = vmatprep.subr.bf16.mxu0 0
        %1402 = vmatpush2.bf16.msra.mxu0 0
        %1403 = vmatprep.subr.bf16.mxu0 0
        %1404 = vmatpush2.bf16.msra.mxu0 0
        %1405 = vmatprep.subr.bf16.mxu0 0
        %1406 = vmatpush2.bf16.msra.mxu0 0
        %1407 = vmatprep.subr.bf16.mxu0 0
        %1408 = vmatpush2.bf16.msra.mxu0 0
        %1409 = vmatprep.mubr.bf16.mxu0 0
        %1410 = vmatmul.mubr.bf16.gmra.mxu0 %v1305
        %v1411 = vpop.f32.mrf.mxu0
        %v1412 = vadd.f32 %v1327, %v1411
        %v1413 = vpop.f32.mrf.mxu0
        %v1414 = vpop.f32.mrf.mxu0
        %v1415 = vpop.f32.mrf.mxu0
        %1416 = vdwg.mxu0
        %v1417 = vadd.f32 %v1199, %v1412
        %1418 = vst.msk [vmem:[%s431] sm:$0xff] %vm440, %v1417
        %s1419 = sand.u32 %s313, 1
        %s1420 = scalar_lea.sflag [#allocation4], %s1419
        %s1421 = sand.u32 %s313, 1
        %s1422 = smul.addr %s1421, 8
        %s1423 = scalar_lea.vmem [#allocation3], %s1422
        // Predicated region
        $region73: #{tpu_custom_call.1} parent=71 // pred_check
          %p1424 = pneg %p323
        $region74: #{tpu_custom_call.1} parent=71 // pred_check_branch
          %1426 = sbr.rel (%p1424) target = $region76
        $region75: #{tpu_custom_call.1} parent=71 // pred_region
          %s1428 = ssub.s32 128, 128
          %1429 = vsyncadd %s1420, %s1428
          %s1430 = smul.addr %s27, 128
          %s1431 = scalar_lea.hbm %s13, %s1430
          %s1433 = sshll.u32 %s1423, 4
          %s1434 = int_to_ptr.vmem [resolvable:$true] %s1433
          %1436 = dma.vmem_to_hbm [thread:$0]  %s1434, 128, %s1431, %s1420
        $region76: #{tpu_custom_call.1} parent=71 // pred_fallthru
          _
      $region72: #{tpu_custom_call.1} parent=5 // pred_fallthru
        _
      %p1437 = scmp.le.s32.totalorder 2, %s22
      // Predicated region
      $region77: #{tpu_custom_call.1} parent=5 // pred_check
        %p1438 = pneg %p1437
      $region78: #{tpu_custom_call.1} parent=5 // pred_check_branch
        %1440 = sbr.rel (%p1438) target = $region80
      $region79: #{tpu_custom_call.1} parent=5 // pred_region
        %s1441 = ssub.s32 %s22, 2
        // Predicated region
        $region81: #{tpu_custom_call.1} parent=79 // pred_check
          %p1442 = pneg %p329
        $region82: #{tpu_custom_call.1} parent=79 // pred_check_branch
          %1444 = sbr.rel (%p1442) target = $region84
        $region83: #{tpu_custom_call.1} parent=79 // pred_region
          %s1445 = sand.u32 %s314, 1
          %s1446 = scalar_lea.sflag [#allocation4], %s1445
          %s1447 = sand.u32 %s314, 1
          %s1448 = smul.addr %s1447, 8
          %s1449 = scalar_lea.vmem [#allocation3], %s1448
          %1450 = dma.done %s1446, 128
        $region84: #{tpu_custom_call.1} parent=79 // pred_fallthru
          _
      $region80: #{tpu_custom_call.1} parent=5 // pred_fallthru
        _
    $region6: #{tpu_custom_call.1} parent=1 // loop_footer
      %s26 = sadd.s32 1, %s22
    $region7: #{tpu_custom_call.1} parent=1 // loop_footer_branch
      %21 = sbr.rel target = $region3
    $region8: #{tpu_custom_call.1} parent=1 // loop_exit
      _
    %1451 = vsyncpa [#allocation4], 1
    %s1452 = scalar_lea.sflag [#allocation4], 1
    %1453 = vsyncpa %s1452, 1

</llo_original>
